<compile_context>
chip_gen: v5e
topology: v5e:2x2
jax: 0.10.0
libtpu: 0.0.40
codegen_flags: <defaults>
</compile_context>

<pallas_src>
import math

import jax
import jax.numpy as jnp
import numpy as np
from jax.experimental import pallas as pl
from jax.experimental.pallas import tpu as pltpu

# ---------------- model hyper-parameters (small, consistent with module) ----
B = 2            # batch
S = 8            # target sequence length
D_MODEL = 32     # d_model
FF_DIM = 64      # ff_dim
N_HEAD = 4       # n_head
HEAD_DIM = D_MODEL // N_HEAD
N_LAYERS = 2     # n_layers
VOCAB = 64       # dec_vocab_size
MAX_LEN = 16     # max_length
LN_EPS = 1e-5    # nn.LayerNorm default
BS = B * S
HBS = N_HEAD * BS          # merged (head, batch*seq) sublane extent = 64
NEG_INF = -1e30


# ----------------------------- Pallas kernel --------------------------------
def decoder_kernel(ids_ref, tok_ref, pos_ref, bias_ref,
                   wqkv_ref, bqkv_ref, wo_ref, bo_ref,
                   g1_ref, be1_ref, w1_ref, b1_ref, w2_ref, b2_ref,
                   g2_ref, be2_ref,
                   wout_ref, bout_ref,
                   out_ref):
    """Single grid step: embedding -> N_LAYERS decoder layers -> vocab logits."""
    # ---- fused embedding: one-hot MXU gather + pre-tiled positional emb ----
    ids = ids_ref[...]                                            # (BS, 1) int32
    onehot = (ids == jax.lax.broadcasted_iota(jnp.int32, (BS, VOCAB), 1)
              ).astype(jnp.float32)                               # (BS, VOCAB)
    # tok_ref already holds tok_emb * sqrt(d_model); pos_ref is tiled to (BS, D)
    x = jnp.dot(onehot, tok_ref[...],
                preferred_element_type=jnp.float32) + pos_ref[...]   # (BS, D)

    bias = bias_ref[...]                                          # (HBS, HBS), 0 / -1e30

    def layer_norm(v, gamma, beta):
        mu = jnp.mean(v, axis=-1, keepdims=True)
        var = jnp.mean((v - mu) ** 2, axis=-1, keepdims=True)
        return (v - mu) * jax.lax.rsqrt(var + LN_EPS) * gamma + beta

    for l in range(N_LAYERS):                                     # static unroll
        # ---- fused Q/K/V projection: one (BS,D)x(D,3D) matmul ---------------
        # wq/bq were pre-scaled by 1/sqrt(HEAD_DIM) at pack time.
        qkv = jnp.dot(x, wqkv_ref[l],
                      preferred_element_type=jnp.float32) + bqkv_ref[l:l + 1]

        # ---- merged-head attention: heads stacked on the sublane axis -------
        # (N_HEAD*BS, HEAD_DIM) = (64, 8)
        qm = jnp.concatenate(
            [qkv[:, h * HEAD_DIM:(h + 1) * HEAD_DIM] for h in range(N_HEAD)], axis=0)
        km = jnp.concatenate(
            [qkv[:, D_MODEL + h * HEAD_DIM:D_MODEL + (h + 1) * HEAD_DIM]
             for h in range(N_HEAD)], axis=0)
        vm = jnp.concatenate(
            [qkv[:, 2 * D_MODEL + h * HEAD_DIM:2 * D_MODEL + (h + 1) * HEAD_DIM]
             for h in range(N_HEAD)], axis=0)

        # ONE score matmul for all heads / batches, block-diagonally biased.
        sc = jax.lax.dot_general(qm, km, (((1,), (1,)), ((), ())),
                                 preferred_element_type=jnp.float32) + bias   # (64, 64)
        sc = sc - jnp.max(sc, axis=-1, keepdims=True)
        p = jnp.exp(sc)
        p = p * pl.reciprocal(jnp.sum(p, axis=-1, keepdims=True), approx=True)
        om = jnp.dot(p, vm, preferred_element_type=jnp.float32)   # (64, HEAD_DIM)

        # reassemble (BS, D) context and hit Wo with a single matmul
        ctx = jnp.concatenate(
            [om[h * BS:(h + 1) * BS, :] for h in range(N_HEAD)], axis=1)      # (BS, D)
        attn = jnp.dot(ctx, wo_ref[l],
                       preferred_element_type=jnp.float32) + bo_ref[l:l + 1]

        x = layer_norm(x + attn, g1_ref[l:l + 1], be1_ref[l:l + 1])

        # ---- position-wise feed-forward -------------------------------------
        h1 = jnp.dot(x, w1_ref[l],
                     preferred_element_type=jnp.float32) + b1_ref[l:l + 1]
        h1 = jnp.maximum(h1, 0.0)
        ff = jnp.dot(h1, w2_ref[l],
                     preferred_element_type=jnp.float32) + b2_ref[l:l + 1]

        x = layer_norm(x + ff, g2_ref[l:l + 1], be2_ref[l:l + 1])

    # ---- final projection to vocabulary (unpadded, full-array out block) ----
    out_ref[...] = jnp.dot(x, wout_ref[...],
                           preferred_element_type=jnp.float32) + bout_ref[...]


# ----------------------------- wrapper ---------------------------------------
def _full_spec(shape):
    n = len(shape)
    return pl.BlockSpec(shape, lambda i, _n=n: (0,) * _n)


def pack_params(params):
    """One-time host-side packing: QKV fusion, 1/sqrt(hd) folded into Q,
    sqrt(d_model) folded into tok_emb, pos emb pre-tiled, attention bias built."""
    inv = 1.0 / math.sqrt(HEAD_DIM)
    wqkv = jnp.concatenate([params["wq"] * inv, params["wk"], params["wv"]], axis=-1)
    bqkv = jnp.concatenate([params["bq"] * inv, params["bk"], params["bv"]], axis=-1)
    tok_emb_scaled = params["tok_emb"] * math.sqrt(D_MODEL)
    pos_rep = jnp.tile(params["pos_emb"][:S], (B, 1))                     # (BS, D)

    # additive bias over the merged (head, batch*seq) slab: valid iff same head
    # AND same batch; every row has >= S valid entries so softmax never sees an
    # all-masked row.
    r = np.arange(HBS)
    same_head = (r[:, None] // BS) == (r[None, :] // BS)
    same_batch = ((r[:, None] % BS) // S) == ((r[None, :] % BS) // S)
    attn_bias = jnp.asarray(
        np.where(same_head & same_batch, 0.0, NEG_INF).astype(np.float32))

    packed = dict(params)
    packed.update(wqkv=wqkv, bqkv=bqkv, tok_emb_scaled=tok_emb_scaled,
                  pos_rep=pos_rep, attn_bias=attn_bias)
    return packed


def decoder_forward(params, target, encoder_output=None, target_mask=None, source_mask=None):
    """Mirrors Decoder.forward(target, encoder_output, target_mask, source_mask).
    encoder_output / masks are accepted but (like the reference) never used."""
    del encoder_output, target_mask, source_mask
    b, s = target.shape

    ids = target.reshape(b * s, 1).astype(jnp.int32)   # contiguous reshape, free

    weight_order = ["tok_emb_scaled", "pos_rep", "attn_bias",
                    "wqkv", "bqkv", "wo", "bo",
                    "ln1_g", "ln1_b", "w1", "b1", "w2", "b2", "ln2_g", "ln2_b",
                    "wout", "bout"]
    weights = [params[k] for k in weight_order]

    in_specs = [_full_spec(ids.shape)] + [_full_spec(w.shape) for w in weights]

    # Advisory cost estimate for the XLA scheduler.
    flops = 2 * BS * VOCAB * D_MODEL                          # one-hot embedding gather
    flops += N_LAYERS * (2 * BS * D_MODEL * 3 * D_MODEL       # fused QKV
                         + 2 * HBS * HEAD_DIM * HBS           # merged scores
                         + 2 * HBS * HBS * HEAD_DIM           # merged P@V
                         + 2 * BS * D_MODEL * D_MODEL         # Wo
                         + 2 * 2 * BS * D_MODEL * FF_DIM)     # FFN
    flops += 2 * BS * D_MODEL * VOCAB                         # vocab projection
    transcendentals = N_LAYERS * (HBS * HBS + HBS) + 2 * N_LAYERS * BS
    bytes_accessed = int(ids.nbytes + sum(int(w.nbytes) for w in weights)
                         + BS * VOCAB * 4)

    out = pl.pallas_call(
        decoder_kernel,
        out_shape=jax.ShapeDtypeStruct((b * s, VOCAB), jnp.float32),
        grid_spec=pltpu.PrefetchScalarGridSpec(
            num_scalar_prefetch=0,
            grid=(1,),
            in_specs=in_specs,
            out_specs=pl.BlockSpec((b * s, VOCAB), lambda i: (0, 0)),
        ),
        compiler_params=pltpu.CompilerParams(dimension_semantics=("arbitrary",)),
        cost_estimate=pl.CostEstimate(flops=flops,
                                      transcendentals=transcendentals,
                                      bytes_accessed=bytes_accessed),
    )(ids, *weights)
    return out.reshape(b, s, VOCAB)


# ----------------------------- pure-JAX reference ----------------------------
def decoder_reference(params, target):
    b, s = target.shape
    x = params["tok_emb"][target] * math.sqrt(D_MODEL) + params["pos_emb"][:s][None, :, :]

    def layer_norm(v, g, be):
        mu = jnp.mean(v, axis=-1, keepdims=True)
        var = jnp.mean((v - mu) ** 2, axis=-1, keepdims=True)
        return (v - mu) / jnp.sqrt(var + LN_EPS) * g + be

    for l in range(N_LAYERS):
        q = x @ params["wq"][l] + params["bq"][l]
        k = x @ params["wk"][l] + params["bk"][l]
        v = x @ params["wv"][l] + params["bv"][l]
        qh = q.reshape(b, s, N_HEAD, HEAD_DIM).transpose(0, 2, 1, 3)
        kh = k.reshape(b, s, N_HEAD, HEAD_DIM).transpose(0, 2, 1, 3)
        vh = v.reshape(b, s, N_HEAD, HEAD_DIM).transpose(0, 2, 1, 3)
        sc = jnp.einsum("bhqd,bhkd->bhqk", qh, kh) / math.sqrt(HEAD_DIM)
        p = jax.nn.softmax(sc, axis=-1)
        o = jnp.einsum("bhqk,bhkd->bhqd", p, vh).transpose(0, 2, 1, 3).reshape(b, s, D_MODEL)
        attn = o @ params["wo"][l] + params["bo"][l]
        x = layer_norm(x + attn, params["ln1_g"][l], params["ln1_b"][l])
        h1 = jnp.maximum(x @ params["w1"][l] + params["b1"][l], 0.0)
        ff = h1 @ params["w2"][l] + params["b2"][l]
        x = layer_norm(x + ff, params["ln2_g"][l], params["ln2_b"][l])
    return x @ params["wout"] + params["bout"]


# ----------------------------- param init ------------------------------------
def init_params(key):
    ks = jax.random.split(key, 12)
    n = lambda k, shape, sc=0.02: (sc * jax.random.normal(k, shape)).astype(jnp.float32)
    p = {
        "tok_emb": n(ks[0], (VOCAB, D_MODEL), 1.0 / math.sqrt(D_MODEL)),
        "pos_emb": n(ks[1], (MAX_LEN, D_MODEL)),
        "wq": n(ks[2], (N_LAYERS, D_MODEL, D_MODEL)),
        "wk": n(ks[3], (N_LAYERS, D_MODEL, D_MODEL)),
        "wv": n(ks[4], (N_LAYERS, D_MODEL, D_MODEL)),
        "wo": n(ks[5], (N_LAYERS, D_MODEL, D_MODEL)),
        "bq": jnp.zeros((N_LAYERS, D_MODEL), jnp.float32),
        "bk": jnp.zeros((N_LAYERS, D_MODEL), jnp.float32),
        "bv": jnp.zeros((N_LAYERS, D_MODEL), jnp.float32),
        "bo": jnp.zeros((N_LAYERS, D_MODEL), jnp.float32),
        "ln1_g": jnp.ones((N_LAYERS, D_MODEL), jnp.float32),
        "ln1_b": jnp.zeros((N_LAYERS, D_MODEL), jnp.float32),
        "ln2_g": jnp.ones((N_LAYERS, D_MODEL), jnp.float32),
        "ln2_b": jnp.zeros((N_LAYERS, D_MODEL), jnp.float32),
        "w1": n(ks[6], (N_LAYERS, D_MODEL, FF_DIM)),
        "b1": jnp.zeros((N_LAYERS, FF_DIM), jnp.float32),
        "w2": n(ks[7], (N_LAYERS, FF_DIM, D_MODEL)),
        "b2": jnp.zeros((N_LAYERS, D_MODEL), jnp.float32),
        "wout": n(ks[8], (D_MODEL, VOCAB)),
        "bout": jnp.zeros((1, VOCAB), jnp.float32),
    }
    return p


# ----------------------------- main -------------------------------------------
if __name__ == "__main__":
    key = jax.random.PRNGKey(0)
    pkey, tkey, ekey = jax.random.split(key, 3)

    params = init_params(pkey)
    packed = pack_params(params)      # one-time host-side packing
    target = jax.random.randint(tkey, (B, S), 0, VOCAB, dtype=jnp.int32)
    # unused by the forward (matching the reference), provided for signature parity
    encoder_output = jax.random.normal(ekey, (B, S, D_MODEL), dtype=jnp.float32)
    target_mask = jnp.ones((B, 1, S, S), jnp.float32)
    source_mask = jnp.ones((B, 1, 1, S), jnp.float32)

    logits = decoder_forward(packed, target, encoder_output, target_mask, source_mask)
    logits = jax.block_until_ready(logits)

    ref = decoder_reference(params, target)
    # tolerance slightly relaxed vs exact-softmax reference because the kernel
    # uses the approximate EUP reciprocal for the softmax denominator (~1e-4 rel).
    np.testing.assert_allclose(np.asarray(logits), np.asarray(ref), rtol=1e-3, atol=1e-3)

    assert logits.shape == (B, S, VOCAB)
    print("KERNEL_OK")
</pallas_src>

<mosaic_0001>
module attributes {stable_mosaic.version = 11 : i64} {
  func.func @decoder_kernel(%arg0: i32, %arg1: memref<16x1xi32, #tpu.memory_space<vmem>>, %arg2: memref<64x32xf32, #tpu.memory_space<vmem>>, %arg3: memref<16x32xf32, #tpu.memory_space<vmem>>, %arg4: memref<64x64xf32, #tpu.memory_space<vmem>>, %arg5: memref<2x32x96xf32, #tpu.memory_space<vmem>>, %arg6: memref<2x96xf32, #tpu.memory_space<vmem>>, %arg7: memref<2x32x32xf32, #tpu.memory_space<vmem>>, %arg8: memref<2x32xf32, #tpu.memory_space<vmem>>, %arg9: memref<2x32xf32, #tpu.memory_space<vmem>>, %arg10: memref<2x32xf32, #tpu.memory_space<vmem>>, %arg11: memref<2x32x64xf32, #tpu.memory_space<vmem>>, %arg12: memref<2x64xf32, #tpu.memory_space<vmem>>, %arg13: memref<2x64x32xf32, #tpu.memory_space<vmem>>, %arg14: memref<2x32xf32, #tpu.memory_space<vmem>>, %arg15: memref<2x32xf32, #tpu.memory_space<vmem>>, %arg16: memref<2x32xf32, #tpu.memory_space<vmem>>, %arg17: memref<32x64xf32, #tpu.memory_space<vmem>>, %arg18: memref<1x64xf32, #tpu.memory_space<vmem>>, %arg19: memref<16x64xf32, #tpu.memory_space<vmem>>) attributes {dimension_semantics = [#tpu.dimension_semantics<arbitrary>], iteration_bounds = array<i64: 1>, scalar_prefetch = 0 : i64, scratch_operands = 0 : i64, tpu.core_type = #tpu.core_type<tc>, window_params = [{pipeline_mode = #tpu.pipeline_mode<synchronous>, transform_indices = @transform_0, window_bounds = array<i64: 16, 1>}, {pipeline_mode = #tpu.pipeline_mode<synchronous>, transform_indices = @transform_1, window_bounds = array<i64: 64, 32>}, {pipeline_mode = #tpu.pipeline_mode<synchronous>, transform_indices = @transform_2, window_bounds = array<i64: 16, 32>}, {pipeline_mode = #tpu.pipeline_mode<synchronous>, transform_indices = @transform_3, window_bounds = array<i64: 64, 64>}, {pipeline_mode = #tpu.pipeline_mode<synchronous>, transform_indices = @transform_4, window_bounds = array<i64: 2, 32, 96>}, {pipeline_mode = #tpu.pipeline_mode<synchronous>, transform_indices = @transform_5, window_bounds = array<i64: 2, 96>}, {pipeline_mode = #tpu.pipeline_mode<synchronous>, transform_indices = @transform_6, window_bounds = array<i64: 2, 32, 32>}, {pipeline_mode = #tpu.pipeline_mode<synchronous>, transform_indices = @transform_7, window_bounds = array<i64: 2, 32>}, {pipeline_mode = #tpu.pipeline_mode<synchronous>, transform_indices = @transform_8, window_bounds = array<i64: 2, 32>}, {pipeline_mode = #tpu.pipeline_mode<synchronous>, transform_indices = @transform_9, window_bounds = array<i64: 2, 32>}, {pipeline_mode = #tpu.pipeline_mode<synchronous>, transform_indices = @transform_10, window_bounds = array<i64: 2, 32, 64>}, {pipeline_mode = #tpu.pipeline_mode<synchronous>, transform_indices = @transform_11, window_bounds = array<i64: 2, 64>}, {pipeline_mode = #tpu.pipeline_mode<synchronous>, transform_indices = @transform_12, window_bounds = array<i64: 2, 64, 32>}, {pipeline_mode = #tpu.pipeline_mode<synchronous>, transform_indices = @transform_13, window_bounds = array<i64: 2, 32>}, {pipeline_mode = #tpu.pipeline_mode<synchronous>, transform_indices = @transform_14, window_bounds = array<i64: 2, 32>}, {pipeline_mode = #tpu.pipeline_mode<synchronous>, transform_indices = @transform_15, window_bounds = array<i64: 2, 32>}, {pipeline_mode = #tpu.pipeline_mode<synchronous>, transform_indices = @transform_16, window_bounds = array<i64: 32, 64>}, {pipeline_mode = #tpu.pipeline_mode<synchronous>, transform_indices = @transform_17, window_bounds = array<i64: 1, 64>}, {pipeline_mode = #tpu.pipeline_mode<synchronous>, transform_indices = @transform_18, window_bounds = array<i64: 16, 64>}]} {
    %c0 = arith.constant 0 : index
    %c0_0 = arith.constant 0 : index
    %0 = vector.load %arg1[%c0, %c0_0] : memref<16x1xi32, #tpu.memory_space<vmem>>, vector<16x1xi32>
    %1 = tpu.iota {dimensions = array<i32: 1>} : vector<16x64xi32>
    %2 = vector.broadcast %0 : vector<16x1xi32> to vector<16x64xi32>
    %3 = arith.cmpi eq, %2, %1 : vector<16x64xi32>
    %4 = arith.extui %3 : vector<16x64xi1> to vector<16x64xi32>
    %5 = arith.sitofp %4 : vector<16x64xi32> to vector<16x64xf32>
    %c0_1 = arith.constant 0 : index
    %c0_2 = arith.constant 0 : index
    %6 = vector.load %arg2[%c0_1, %c0_2] : memref<64x32xf32, #tpu.memory_space<vmem>>, vector<64x32xf32>
    %cst = arith.constant dense<0.000000e+00> : vector<16x32xf32>
    %7 = tpu.matmul %5, %6, %cst {dimension_numbers = #tpu.dot_dimension_numbers<[1], [0], [0], [1], [0, 0, 1, 1], [], []>} : vector<16x64xf32>, vector<64x32xf32>, vector<16x32xf32> -> vector<16x32xf32>
    %c0_3 = arith.constant 0 : index
    %c0_4 = arith.constant 0 : index
    %8 = vector.load %arg3[%c0_3, %c0_4] : memref<16x32xf32, #tpu.memory_space<vmem>>, vector<16x32xf32>
    %9 = arith.addf %7, %8 : vector<16x32xf32>
    %c0_5 = arith.constant 0 : index
    %c0_6 = arith.constant 0 : index
    %10 = vector.load %arg4[%c0_5, %c0_6] : memref<64x64xf32, #tpu.memory_space<vmem>>, vector<64x64xf32>
    %c0_7 = arith.constant 0 : index
    %c0_8 = arith.constant 0 : index
    %c0_9 = arith.constant 0 : index
    %11 = vector.load %arg5[%c0_7, %c0_8, %c0_9] : memref<2x32x96xf32, #tpu.memory_space<vmem>>, vector<1x32x96xf32>
    %12 = vector.shape_cast %11 : vector<1x32x96xf32> to vector<32x96xf32>
    %cst_10 = arith.constant dense<0.000000e+00> : vector<16x96xf32>
    %13 = tpu.matmul %9, %12, %cst_10 {dimension_numbers = #tpu.dot_dimension_numbers<[1], [0], [0], [1], [0, 0, 1, 1], [], []>} : vector<16x32xf32>, vector<32x96xf32>, vector<16x96xf32> -> vector<16x96xf32>
    %c0_11 = arith.constant 0 : index
    %c0_12 = arith.constant 0 : index
    %14 = vector.load %arg6[%c0_11, %c0_12] : memref<2x96xf32, #tpu.memory_space<vmem>>, vector<1x96xf32>
    %15 = vector.broadcast %14 : vector<1x96xf32> to vector<16x96xf32>
    %16 = arith.addf %13, %15 : vector<16x96xf32>
    %17 = vector.extract_strided_slice %16 {offsets = [0, 0], sizes = [16, 8], strides = [1, 1]} : vector<16x96xf32> to vector<16x8xf32>
    %18 = vector.extract_strided_slice %16 {offsets = [0, 8], sizes = [16, 8], strides = [1, 1]} : vector<16x96xf32> to vector<16x8xf32>
    %19 = vector.extract_strided_slice %16 {offsets = [0, 16], sizes = [16, 8], strides = [1, 1]} : vector<16x96xf32> to vector<16x8xf32>
    %20 = vector.extract_strided_slice %16 {offsets = [0, 24], sizes = [16, 8], strides = [1, 1]} : vector<16x96xf32> to vector<16x8xf32>
    %21 = tpu.concatenate %17, %18, %19, %20 in 0 : vector<16x8xf32>, vector<16x8xf32>, vector<16x8xf32>, vector<16x8xf32> -> vector<64x8xf32>
    %22 = vector.extract_strided_slice %16 {offsets = [0, 32], sizes = [16, 8], strides = [1, 1]} : vector<16x96xf32> to vector<16x8xf32>
    %23 = vector.extract_strided_slice %16 {offsets = [0, 40], sizes = [16, 8], strides = [1, 1]} : vector<16x96xf32> to vector<16x8xf32>
    %24 = vector.extract_strided_slice %16 {offsets = [0, 48], sizes = [16, 8], strides = [1, 1]} : vector<16x96xf32> to vector<16x8xf32>
    %25 = vector.extract_strided_slice %16 {offsets = [0, 56], sizes = [16, 8], strides = [1, 1]} : vector<16x96xf32> to vector<16x8xf32>
    %26 = tpu.concatenate %22, %23, %24, %25 in 0 : vector<16x8xf32>, vector<16x8xf32>, vector<16x8xf32>, vector<16x8xf32> -> vector<64x8xf32>
    %27 = vector.extract_strided_slice %16 {offsets = [0, 64], sizes = [16, 8], strides = [1, 1]} : vector<16x96xf32> to vector<16x8xf32>
    %28 = vector.extract_strided_slice %16 {offsets = [0, 72], sizes = [16, 8], strides = [1, 1]} : vector<16x96xf32> to vector<16x8xf32>
    %29 = vector.extract_strided_slice %16 {offsets = [0, 80], sizes = [16, 8], strides = [1, 1]} : vector<16x96xf32> to vector<16x8xf32>
    %30 = vector.extract_strided_slice %16 {offsets = [0, 88], sizes = [16, 8], strides = [1, 1]} : vector<16x96xf32> to vector<16x8xf32>
    %31 = tpu.concatenate %27, %28, %29, %30 in 0 : vector<16x8xf32>, vector<16x8xf32>, vector<16x8xf32>, vector<16x8xf32> -> vector<64x8xf32>
    %cst_13 = arith.constant dense<0.000000e+00> : vector<64x64xf32>
    %32 = tpu.matmul %21, %26, %cst_13 {dimension_numbers = #tpu.dot_dimension_numbers<[1], [1], [0], [0], [0, 0, 1, 0], [], []>} : vector<64x8xf32>, vector<64x8xf32>, vector<64x64xf32> -> vector<64x64xf32>
    %33 = arith.addf %32, %10 : vector<64x64xf32>
    %cst_14 = arith.constant dense<0xFF800000> : vector<64xf32>
    %34 = vector.multi_reduction <maximumf>, %33, %cst_14 [1] : vector<64x64xf32> to vector<64xf32>
    %35 = vector.shape_cast %34 : vector<64xf32> to vector<64x1xf32>
    %36 = vector.broadcast %35 : vector<64x1xf32> to vector<64x64xf32>
    %37 = arith.subf %33, %36 : vector<64x64xf32>
    %38 = math.exp %37 : vector<64x64xf32>
    %cst_15 = arith.constant dense<0.000000e+00> : vector<64xf32>
    %39 = vector.multi_reduction <add>, %38, %cst_15 [1] : vector<64x64xf32> to vector<64xf32>
    %40 = vector.shape_cast %39 : vector<64xf32> to vector<64x1xf32>
    %41 = tpu.reciprocal %40 {approx = true} : vector<64x1xf32> -> vector<64x1xf32>
    %42 = vector.broadcast %41 : vector<64x1xf32> to vector<64x64xf32>
    %43 = arith.mulf %38, %42 : vector<64x64xf32>
    %cst_16 = arith.constant dense<0.000000e+00> : vector<64x8xf32>
    %44 = tpu.matmul %43, %31, %cst_16 {dimension_numbers = #tpu.dot_dimension_numbers<[1], [0], [0], [1], [0, 0, 1, 1], [], []>} : vector<64x64xf32>, vector<64x8xf32>, vector<64x8xf32> -> vector<64x8xf32>
    %45 = vector.extract_strided_slice %44 {offsets = [0, 0], sizes = [16, 8], strides = [1, 1]} : vector<64x8xf32> to vector<16x8xf32>
    %46 = vector.extract_strided_slice %44 {offsets = [16, 0], sizes = [16, 8], strides = [1, 1]} : vector<64x8xf32> to vector<16x8xf32>
    %47 = vector.extract_strided_slice %44 {offsets = [32, 0], sizes = [16, 8], strides = [1, 1]} : vector<64x8xf32> to vector<16x8xf32>
    %48 = vector.extract_strided_slice %44 {offsets = [48, 0], sizes = [16, 8], strides = [1, 1]} : vector<64x8xf32> to vector<16x8xf32>
    %49 = tpu.concatenate %45, %46, %47, %48 in 1 : vector<16x8xf32>, vector<16x8xf32>, vector<16x8xf32>, vector<16x8xf32> -> vector<16x32xf32>
    %c0_17 = arith.constant 0 : index
    %c0_18 = arith.constant 0 : index
    %c0_19 = arith.constant 0 : index
    %50 = vector.load %arg7[%c0_17, %c0_18, %c0_19] : memref<2x32x32xf32, #tpu.memory_space<vmem>>, vector<1x32x32xf32>
    %51 = vector.shape_cast %50 : vector<1x32x32xf32> to vector<32x32xf32>
    %cst_20 = arith.constant dense<0.000000e+00> : vector<16x32xf32>
    %52 = tpu.matmul %49, %51, %cst_20 {dimension_numbers = #tpu.dot_dimension_numbers<[1], [0], [0], [1], [0, 0, 1, 1], [], []>} : vector<16x32xf32>, vector<32x32xf32>, vector<16x32xf32> -> vector<16x32xf32>
    %c0_21 = arith.constant 0 : index
    %c0_22 = arith.constant 0 : index
    %53 = vector.load %arg8[%c0_21, %c0_22] : memref<2x32xf32, #tpu.memory_space<vmem>>, vector<1x32xf32>
    %54 = vector.broadcast %53 : vector<1x32xf32> to vector<16x32xf32>
    %55 = arith.addf %52, %54 : vector<16x32xf32>
    %56 = arith.addf %9, %55 : vector<16x32xf32>
    %c0_23 = arith.constant 0 : index
    %c0_24 = arith.constant 0 : index
    %57 = vector.load %arg9[%c0_23, %c0_24] : memref<2x32xf32, #tpu.memory_space<vmem>>, vector<1x32xf32>
    %c0_25 = arith.constant 0 : index
    %c0_26 = arith.constant 0 : index
    %58 = vector.load %arg10[%c0_25, %c0_26] : memref<2x32xf32, #tpu.memory_space<vmem>>, vector<1x32xf32>
    %cst_27 = arith.constant dense<0.000000e+00> : vector<16xf32>
    %59 = vector.multi_reduction <add>, %56, %cst_27 [1] : vector<16x32xf32> to vector<16xf32>
    %60 = vector.shape_cast %59 : vector<16xf32> to vector<16x1xf32>
    %cst_28 = arith.constant 3.200000e+01 : f32
    %61 = vector.broadcast %cst_28 : f32 to vector<16x1xf32>
    %62 = arith.divf %60, %61 : vector<16x1xf32>
    %63 = vector.broadcast %62 : vector<16x1xf32> to vector<16x32xf32>
    %64 = arith.subf %56, %63 : vector<16x32xf32>
    %65 = arith.mulf %64, %64 : vector<16x32xf32>
    %cst_29 = arith.constant dense<0.000000e+00> : vector<16xf32>
    %66 = vector.multi_reduction <add>, %65, %cst_29 [1] : vector<16x32xf32> to vector<16xf32>
    %67 = vector.shape_cast %66 : vector<16xf32> to vector<16x1xf32>
    %cst_30 = arith.constant 3.200000e+01 : f32
    %68 = vector.broadcast %cst_30 : f32 to vector<16x1xf32>
    %69 = arith.divf %67, %68 : vector<16x1xf32>
    %70 = vector.broadcast %62 : vector<16x1xf32> to vector<16x32xf32>
    %71 = arith.subf %56, %70 : vector<16x32xf32>
    %cst_31 = arith.constant 9.99999974E-6 : f32
    %72 = vector.broadcast %cst_31 : f32 to vector<16x1xf32>
    %73 = arith.addf %69, %72 : vector<16x1xf32>
    %74 = math.rsqrt %73 : vector<16x1xf32>
    %75 = vector.broadcast %74 : vector<16x1xf32> to vector<16x32xf32>
    %76 = arith.mulf %71, %75 : vector<16x32xf32>
    %77 = vector.broadcast %57 : vector<1x32xf32> to vector<16x32xf32>
    %78 = arith.mulf %76, %77 : vector<16x32xf32>
    %79 = vector.broadcast %58 : vector<1x32xf32> to vector<16x32xf32>
    %80 = arith.addf %78, %79 : vector<16x32xf32>
    %c0_32 = arith.constant 0 : index
    %c0_33 = arith.constant 0 : index
    %c0_34 = arith.constant 0 : index
    %81 = vector.load %arg11[%c0_32, %c0_33, %c0_34] : memref<2x32x64xf32, #tpu.memory_space<vmem>>, vector<1x32x64xf32>
    %82 = vector.shape_cast %81 : vector<1x32x64xf32> to vector<32x64xf32>
    %cst_35 = arith.constant dense<0.000000e+00> : vector<16x64xf32>
    %83 = tpu.matmul %80, %82, %cst_35 {dimension_numbers = #tpu.dot_dimension_numbers<[1], [0], [0], [1], [0, 0, 1, 1], [], []>} : vector<16x32xf32>, vector<32x64xf32>, vector<16x64xf32> -> vector<16x64xf32>
    %c0_36 = arith.constant 0 : index
    %c0_37 = arith.constant 0 : index
    %84 = vector.load %arg12[%c0_36, %c0_37] : memref<2x64xf32, #tpu.memory_space<vmem>>, vector<1x64xf32>
    %85 = vector.broadcast %84 : vector<1x64xf32> to vector<16x64xf32>
    %86 = arith.addf %83, %85 : vector<16x64xf32>
    %cst_38 = arith.constant 0.000000e+00 : f32
    %87 = vector.broadcast %cst_38 : f32 to vector<16x64xf32>
    %88 = arith.maximumf %86, %87 : vector<16x64xf32>
    %c0_39 = arith.constant 0 : index
    %c0_40 = arith.constant 0 : index
    %c0_41 = arith.constant 0 : index
    %89 = vector.load %arg13[%c0_39, %c0_40, %c0_41] : memref<2x64x32xf32, #tpu.memory_space<vmem>>, vector<1x64x32xf32>
    %90 = vector.shape_cast %89 : vector<1x64x32xf32> to vector<64x32xf32>
    %cst_42 = arith.constant dense<0.000000e+00> : vector<16x32xf32>
    %91 = tpu.matmul %88, %90, %cst_42 {dimension_numbers = #tpu.dot_dimension_numbers<[1], [0], [0], [1], [0, 0, 1, 1], [], []>} : vector<16x64xf32>, vector<64x32xf32>, vector<16x32xf32> -> vector<16x32xf32>
    %c0_43 = arith.constant 0 : index
    %c0_44 = arith.constant 0 : index
    %92 = vector.load %arg14[%c0_43, %c0_44] : memref<2x32xf32, #tpu.memory_space<vmem>>, vector<1x32xf32>
    %93 = vector.broadcast %92 : vector<1x32xf32> to vector<16x32xf32>
    %94 = arith.addf %91, %93 : vector<16x32xf32>
    %95 = arith.addf %80, %94 : vector<16x32xf32>
    %c0_45 = arith.constant 0 : index
    %c0_46 = arith.constant 0 : index
    %96 = vector.load %arg15[%c0_45, %c0_46] : memref<2x32xf32, #tpu.memory_space<vmem>>, vector<1x32xf32>
    %c0_47 = arith.constant 0 : index
    %c0_48 = arith.constant 0 : index
    %97 = vector.load %arg16[%c0_47, %c0_48] : memref<2x32xf32, #tpu.memory_space<vmem>>, vector<1x32xf32>
    %cst_49 = arith.constant dense<0.000000e+00> : vector<16xf32>
    %98 = vector.multi_reduction <add>, %95, %cst_49 [1] : vector<16x32xf32> to vector<16xf32>
    %99 = vector.shape_cast %98 : vector<16xf32> to vector<16x1xf32>
    %cst_50 = arith.constant 3.200000e+01 : f32
    %100 = vector.broadcast %cst_50 : f32 to vector<16x1xf32>
    %101 = arith.divf %99, %100 : vector<16x1xf32>
    %102 = vector.broadcast %101 : vector<16x1xf32> to vector<16x32xf32>
    %103 = arith.subf %95, %102 : vector<16x32xf32>
    %104 = arith.mulf %103, %103 : vector<16x32xf32>
    %cst_51 = arith.constant dense<0.000000e+00> : vector<16xf32>
    %105 = vector.multi_reduction <add>, %104, %cst_51 [1] : vector<16x32xf32> to vector<16xf32>
    %106 = vector.shape_cast %105 : vector<16xf32> to vector<16x1xf32>
    %cst_52 = arith.constant 3.200000e+01 : f32
    %107 = vector.broadcast %cst_52 : f32 to vector<16x1xf32>
    %108 = arith.divf %106, %107 : vector<16x1xf32>
    %109 = vector.broadcast %101 : vector<16x1xf32> to vector<16x32xf32>
    %110 = arith.subf %95, %109 : vector<16x32xf32>
    %cst_53 = arith.constant 9.99999974E-6 : f32
    %111 = vector.broadcast %cst_53 : f32 to vector<16x1xf32>
    %112 = arith.addf %108, %111 : vector<16x1xf32>
    %113 = math.rsqrt %112 : vector<16x1xf32>
    %114 = vector.broadcast %113 : vector<16x1xf32> to vector<16x32xf32>
    %115 = arith.mulf %110, %114 : vector<16x32xf32>
    %116 = vector.broadcast %96 : vector<1x32xf32> to vector<16x32xf32>
    %117 = arith.mulf %115, %116 : vector<16x32xf32>
    %118 = vector.broadcast %97 : vector<1x32xf32> to vector<16x32xf32>
    %119 = arith.addf %117, %118 : vector<16x32xf32>
    %c1 = arith.constant 1 : index
    %c0_54 = arith.constant 0 : index
    %c0_55 = arith.constant 0 : index
    %120 = vector.load %arg5[%c1, %c0_54, %c0_55] : memref<2x32x96xf32, #tpu.memory_space<vmem>>, vector<1x32x96xf32>
    %121 = vector.shape_cast %120 : vector<1x32x96xf32> to vector<32x96xf32>
    %cst_56 = arith.constant dense<0.000000e+00> : vector<16x96xf32>
    %122 = tpu.matmul %119, %121, %cst_56 {dimension_numbers = #tpu.dot_dimension_numbers<[1], [0], [0], [1], [0, 0, 1, 1], [], []>} : vector<16x32xf32>, vector<32x96xf32>, vector<16x96xf32> -> vector<16x96xf32>
    %c1_57 = arith.constant 1 : index
    %c0_58 = arith.constant 0 : index
    %123 = vector.load %arg6[%c1_57, %c0_58] : memref<2x96xf32, #tpu.memory_space<vmem>>, vector<1x96xf32>
    %124 = vector.broadcast %123 : vector<1x96xf32> to vector<16x96xf32>
    %125 = arith.addf %122, %124 : vector<16x96xf32>
    %126 = vector.extract_strided_slice %125 {offsets = [0, 0], sizes = [16, 8], strides = [1, 1]} : vector<16x96xf32> to vector<16x8xf32>
    %127 = vector.extract_strided_slice %125 {offsets = [0, 8], sizes = [16, 8], strides = [1, 1]} : vector<16x96xf32> to vector<16x8xf32>
    %128 = vector.extract_strided_slice %125 {offsets = [0, 16], sizes = [16, 8], strides = [1, 1]} : vector<16x96xf32> to vector<16x8xf32>
    %129 = vector.extract_strided_slice %125 {offsets = [0, 24], sizes = [16, 8], strides = [1, 1]} : vector<16x96xf32> to vector<16x8xf32>
    %130 = tpu.concatenate %126, %127, %128, %129 in 0 : vector<16x8xf32>, vector<16x8xf32>, vector<16x8xf32>, vector<16x8xf32> -> vector<64x8xf32>
    %131 = vector.extract_strided_slice %125 {offsets = [0, 32], sizes = [16, 8], strides = [1, 1]} : vector<16x96xf32> to vector<16x8xf32>
    %132 = vector.extract_strided_slice %125 {offsets = [0, 40], sizes = [16, 8], strides = [1, 1]} : vector<16x96xf32> to vector<16x8xf32>
    %133 = vector.extract_strided_slice %125 {offsets = [0, 48], sizes = [16, 8], strides = [1, 1]} : vector<16x96xf32> to vector<16x8xf32>
    %134 = vector.extract_strided_slice %125 {offsets = [0, 56], sizes = [16, 8], strides = [1, 1]} : vector<16x96xf32> to vector<16x8xf32>
    %135 = tpu.concatenate %131, %132, %133, %134 in 0 : vector<16x8xf32>, vector<16x8xf32>, vector<16x8xf32>, vector<16x8xf32> -> vector<64x8xf32>
    %136 = vector.extract_strided_slice %125 {offsets = [0, 64], sizes = [16, 8], strides = [1, 1]} : vector<16x96xf32> to vector<16x8xf32>
    %137 = vector.extract_strided_slice %125 {offsets = [0, 72], sizes = [16, 8], strides = [1, 1]} : vector<16x96xf32> to vector<16x8xf32>
    %138 = vector.extract_strided_slice %125 {offsets = [0, 80], sizes = [16, 8], strides = [1, 1]} : vector<16x96xf32> to vector<16x8xf32>
    %139 = vector.extract_strided_slice %125 {offsets = [0, 88], sizes = [16, 8], strides = [1, 1]} : vector<16x96xf32> to vector<16x8xf32>
    %140 = tpu.concatenate %136, %137, %138, %139 in 0 : vector<16x8xf32>, vector<16x8xf32>, vector<16x8xf32>, vector<16x8xf32> -> vector<64x8xf32>
    %cst_59 = arith.constant dense<0.000000e+00> : vector<64x64xf32>
    %141 = tpu.matmul %130, %135, %cst_59 {dimension_numbers = #tpu.dot_dimension_numbers<[1], [1], [0], [0], [0, 0, 1, 0], [], []>} : vector<64x8xf32>, vector<64x8xf32>, vector<64x64xf32> -> vector<64x64xf32>
    %142 = arith.addf %141, %10 : vector<64x64xf32>
    %cst_60 = arith.constant dense<0xFF800000> : vector<64xf32>
    %143 = vector.multi_reduction <maximumf>, %142, %cst_60 [1] : vector<64x64xf32> to vector<64xf32>
    %144 = vector.shape_cast %143 : vector<64xf32> to vector<64x1xf32>
    %145 = vector.broadcast %144 : vector<64x1xf32> to vector<64x64xf32>
    %146 = arith.subf %142, %145 : vector<64x64xf32>
    %147 = math.exp %146 : vector<64x64xf32>
    %cst_61 = arith.constant dense<0.000000e+00> : vector<64xf32>
    %148 = vector.multi_reduction <add>, %147, %cst_61 [1] : vector<64x64xf32> to vector<64xf32>
    %149 = vector.shape_cast %148 : vector<64xf32> to vector<64x1xf32>
    %150 = tpu.reciprocal %149 {approx = true} : vector<64x1xf32> -> vector<64x1xf32>
    %151 = vector.broadcast %150 : vector<64x1xf32> to vector<64x64xf32>
    %152 = arith.mulf %147, %151 : vector<64x64xf32>
    %cst_62 = arith.constant dense<0.000000e+00> : vector<64x8xf32>
    %153 = tpu.matmul %152, %140, %cst_62 {dimension_numbers = #tpu.dot_dimension_numbers<[1], [0], [0], [1], [0, 0, 1, 1], [], []>} : vector<64x64xf32>, vector<64x8xf32>, vector<64x8xf32> -> vector<64x8xf32>
    %154 = vector.extract_strided_slice %153 {offsets = [0, 0], sizes = [16, 8], strides = [1, 1]} : vector<64x8xf32> to vector<16x8xf32>
    %155 = vector.extract_strided_slice %153 {offsets = [16, 0], sizes = [16, 8], strides = [1, 1]} : vector<64x8xf32> to vector<16x8xf32>
    %156 = vector.extract_strided_slice %153 {offsets = [32, 0], sizes = [16, 8], strides = [1, 1]} : vector<64x8xf32> to vector<16x8xf32>
    %157 = vector.extract_strided_slice %153 {offsets = [48, 0], sizes = [16, 8], strides = [1, 1]} : vector<64x8xf32> to vector<16x8xf32>
    %158 = tpu.concatenate %154, %155, %156, %157 in 1 : vector<16x8xf32>, vector<16x8xf32>, vector<16x8xf32>, vector<16x8xf32> -> vector<16x32xf32>
    %c1_63 = arith.constant 1 : index
    %c0_64 = arith.constant 0 : index
    %c0_65 = arith.constant 0 : index
    %159 = vector.load %arg7[%c1_63, %c0_64, %c0_65] : memref<2x32x32xf32, #tpu.memory_space<vmem>>, vector<1x32x32xf32>
    %160 = vector.shape_cast %159 : vector<1x32x32xf32> to vector<32x32xf32>
    %cst_66 = arith.constant dense<0.000000e+00> : vector<16x32xf32>
    %161 = tpu.matmul %158, %160, %cst_66 {dimension_numbers = #tpu.dot_dimension_numbers<[1], [0], [0], [1], [0, 0, 1, 1], [], []>} : vector<16x32xf32>, vector<32x32xf32>, vector<16x32xf32> -> vector<16x32xf32>
    %c1_67 = arith.constant 1 : index
    %c0_68 = arith.constant 0 : index
    %162 = vector.load %arg8[%c1_67, %c0_68] : memref<2x32xf32, #tpu.memory_space<vmem>>, vector<1x32xf32>
    %163 = vector.broadcast %162 : vector<1x32xf32> to vector<16x32xf32>
    %164 = arith.addf %161, %163 : vector<16x32xf32>
    %165 = arith.addf %119, %164 : vector<16x32xf32>
    %c1_69 = arith.constant 1 : index
    %c0_70 = arith.constant 0 : index
    %166 = vector.load %arg9[%c1_69, %c0_70] : memref<2x32xf32, #tpu.memory_space<vmem>>, vector<1x32xf32>
    %c1_71 = arith.constant 1 : index
    %c0_72 = arith.constant 0 : index
    %167 = vector.load %arg10[%c1_71, %c0_72] : memref<2x32xf32, #tpu.memory_space<vmem>>, vector<1x32xf32>
    %cst_73 = arith.constant dense<0.000000e+00> : vector<16xf32>
    %168 = vector.multi_reduction <add>, %165, %cst_73 [1] : vector<16x32xf32> to vector<16xf32>
    %169 = vector.shape_cast %168 : vector<16xf32> to vector<16x1xf32>
    %cst_74 = arith.constant 3.200000e+01 : f32
    %170 = vector.broadcast %cst_74 : f32 to vector<16x1xf32>
    %171 = arith.divf %169, %170 : vector<16x1xf32>
    %172 = vector.broadcast %171 : vector<16x1xf32> to vector<16x32xf32>
    %173 = arith.subf %165, %172 : vector<16x32xf32>
    %174 = arith.mulf %173, %173 : vector<16x32xf32>
    %cst_75 = arith.constant dense<0.000000e+00> : vector<16xf32>
    %175 = vector.multi_reduction <add>, %174, %cst_75 [1] : vector<16x32xf32> to vector<16xf32>
    %176 = vector.shape_cast %175 : vector<16xf32> to vector<16x1xf32>
    %cst_76 = arith.constant 3.200000e+01 : f32
    %177 = vector.broadcast %cst_76 : f32 to vector<16x1xf32>
    %178 = arith.divf %176, %177 : vector<16x1xf32>
    %179 = vector.broadcast %171 : vector<16x1xf32> to vector<16x32xf32>
    %180 = arith.subf %165, %179 : vector<16x32xf32>
    %cst_77 = arith.constant 9.99999974E-6 : f32
    %181 = vector.broadcast %cst_77 : f32 to vector<16x1xf32>
    %182 = arith.addf %178, %181 : vector<16x1xf32>
    %183 = math.rsqrt %182 : vector<16x1xf32>
    %184 = vector.broadcast %183 : vector<16x1xf32> to vector<16x32xf32>
    %185 = arith.mulf %180, %184 : vector<16x32xf32>
    %186 = vector.broadcast %166 : vector<1x32xf32> to vector<16x32xf32>
    %187 = arith.mulf %185, %186 : vector<16x32xf32>
    %188 = vector.broadcast %167 : vector<1x32xf32> to vector<16x32xf32>
    %189 = arith.addf %187, %188 : vector<16x32xf32>
    %c1_78 = arith.constant 1 : index
    %c0_79 = arith.constant 0 : index
    %c0_80 = arith.constant 0 : index
    %190 = vector.load %arg11[%c1_78, %c0_79, %c0_80] : memref<2x32x64xf32, #tpu.memory_space<vmem>>, vector<1x32x64xf32>
    %191 = vector.shape_cast %190 : vector<1x32x64xf32> to vector<32x64xf32>
    %cst_81 = arith.constant dense<0.000000e+00> : vector<16x64xf32>
    %192 = tpu.matmul %189, %191, %cst_81 {dimension_numbers = #tpu.dot_dimension_numbers<[1], [0], [0], [1], [0, 0, 1, 1], [], []>} : vector<16x32xf32>, vector<32x64xf32>, vector<16x64xf32> -> vector<16x64xf32>
    %c1_82 = arith.constant 1 : index
    %c0_83 = arith.constant 0 : index
    %193 = vector.load %arg12[%c1_82, %c0_83] : memref<2x64xf32, #tpu.memory_space<vmem>>, vector<1x64xf32>
    %194 = vector.broadcast %193 : vector<1x64xf32> to vector<16x64xf32>
    %195 = arith.addf %192, %194 : vector<16x64xf32>
    %cst_84 = arith.constant 0.000000e+00 : f32
    %196 = vector.broadcast %cst_84 : f32 to vector<16x64xf32>
    %197 = arith.maximumf %195, %196 : vector<16x64xf32>
    %c1_85 = arith.constant 1 : index
    %c0_86 = arith.constant 0 : index
    %c0_87 = arith.constant 0 : index
    %198 = vector.load %arg13[%c1_85, %c0_86, %c0_87] : memref<2x64x32xf32, #tpu.memory_space<vmem>>, vector<1x64x32xf32>
    %199 = vector.shape_cast %198 : vector<1x64x32xf32> to vector<64x32xf32>
    %cst_88 = arith.constant dense<0.000000e+00> : vector<16x32xf32>
    %200 = tpu.matmul %197, %199, %cst_88 {dimension_numbers = #tpu.dot_dimension_numbers<[1], [0], [0], [1], [0, 0, 1, 1], [], []>} : vector<16x64xf32>, vector<64x32xf32>, vector<16x32xf32> -> vector<16x32xf32>
    %c1_89 = arith.constant 1 : index
    %c0_90 = arith.constant 0 : index
    %201 = vector.load %arg14[%c1_89, %c0_90] : memref<2x32xf32, #tpu.memory_space<vmem>>, vector<1x32xf32>
    %202 = vector.broadcast %201 : vector<1x32xf32> to vector<16x32xf32>
    %203 = arith.addf %200, %202 : vector<16x32xf32>
    %204 = arith.addf %189, %203 : vector<16x32xf32>
    %c1_91 = arith.constant 1 : index
    %c0_92 = arith.constant 0 : index
    %205 = vector.load %arg15[%c1_91, %c0_92] : memref<2x32xf32, #tpu.memory_space<vmem>>, vector<1x32xf32>
    %c1_93 = arith.constant 1 : index
    %c0_94 = arith.constant 0 : index
    %206 = vector.load %arg16[%c1_93, %c0_94] : memref<2x32xf32, #tpu.memory_space<vmem>>, vector<1x32xf32>
    %cst_95 = arith.constant dense<0.000000e+00> : vector<16xf32>
    %207 = vector.multi_reduction <add>, %204, %cst_95 [1] : vector<16x32xf32> to vector<16xf32>
    %208 = vector.shape_cast %207 : vector<16xf32> to vector<16x1xf32>
    %cst_96 = arith.constant 3.200000e+01 : f32
    %209 = vector.broadcast %cst_96 : f32 to vector<16x1xf32>
    %210 = arith.divf %208, %209 : vector<16x1xf32>
    %211 = vector.broadcast %210 : vector<16x1xf32> to vector<16x32xf32>
    %212 = arith.subf %204, %211 : vector<16x32xf32>
    %213 = arith.mulf %212, %212 : vector<16x32xf32>
    %cst_97 = arith.constant dense<0.000000e+00> : vector<16xf32>
    %214 = vector.multi_reduction <add>, %213, %cst_97 [1] : vector<16x32xf32> to vector<16xf32>
    %215 = vector.shape_cast %214 : vector<16xf32> to vector<16x1xf32>
    %cst_98 = arith.constant 3.200000e+01 : f32
    %216 = vector.broadcast %cst_98 : f32 to vector<16x1xf32>
    %217 = arith.divf %215, %216 : vector<16x1xf32>
    %218 = vector.broadcast %210 : vector<16x1xf32> to vector<16x32xf32>
    %219 = arith.subf %204, %218 : vector<16x32xf32>
    %cst_99 = arith.constant 9.99999974E-6 : f32
    %220 = vector.broadcast %cst_99 : f32 to vector<16x1xf32>
    %221 = arith.addf %217, %220 : vector<16x1xf32>
    %222 = math.rsqrt %221 : vector<16x1xf32>
    %223 = vector.broadcast %222 : vector<16x1xf32> to vector<16x32xf32>
    %224 = arith.mulf %219, %223 : vector<16x32xf32>
    %225 = vector.broadcast %205 : vector<1x32xf32> to vector<16x32xf32>
    %226 = arith.mulf %224, %225 : vector<16x32xf32>
    %227 = vector.broadcast %206 : vector<1x32xf32> to vector<16x32xf32>
    %228 = arith.addf %226, %227 : vector<16x32xf32>
    %c0_100 = arith.constant 0 : index
    %c0_101 = arith.constant 0 : index
    %229 = vector.load %arg17[%c0_100, %c0_101] : memref<32x64xf32, #tpu.memory_space<vmem>>, vector<32x64xf32>
    %cst_102 = arith.constant dense<0.000000e+00> : vector<16x64xf32>
    %230 = tpu.matmul %228, %229, %cst_102 {dimension_numbers = #tpu.dot_dimension_numbers<[1], [0], [0], [1], [0, 0, 1, 1], [], []>} : vector<16x32xf32>, vector<32x64xf32>, vector<16x64xf32> -> vector<16x64xf32>
    %c0_103 = arith.constant 0 : index
    %c0_104 = arith.constant 0 : index
    %231 = vector.load %arg18[%c0_103, %c0_104] : memref<1x64xf32, #tpu.memory_space<vmem>>, vector<1x64xf32>
    %232 = vector.broadcast %231 : vector<1x64xf32> to vector<16x64xf32>
    %233 = arith.addf %230, %232 : vector<16x64xf32>
    %c0_105 = arith.constant 0 : index
    %c0_106 = arith.constant 0 : index
    %234 = vector.load %arg19[%c0_105, %c0_106] : memref<16x64xf32, #tpu.memory_space<vmem>>, vector<16x64xf32>
    tpu.vector_store %arg19[%c0_105, %c0_106], %233 {strides = array<i32>} : memref<16x64xf32, #tpu.memory_space<vmem>>, vector<16x64xf32>,
    return
  }
  func.func @transform_0(%arg0: i32) -> (i32, i32) {
    %c0_i32 = arith.constant 0 : i32
    %c0_i32_0 = arith.constant 0 : i32
    %c0_i32_1 = arith.constant 0 : i32
    return %c0_i32, %c0_i32_0 : i32, i32
  }
  func.func @transform_1(%arg0: i32) -> (i32, i32) {
    %c0_i32 = arith.constant 0 : i32
    %c0_i32_0 = arith.constant 0 : i32
    %c0_i32_1 = arith.constant 0 : i32
    return %c0_i32, %c0_i32_0 : i32, i32
  }
  func.func @transform_2(%arg0: i32) -> (i32, i32) {
    %c0_i32 = arith.constant 0 : i32
    %c0_i32_0 = arith.constant 0 : i32
    %c0_i32_1 = arith.constant 0 : i32
    return %c0_i32, %c0_i32_0 : i32, i32
  }
  func.func @transform_3(%arg0: i32) -> (i32, i32) {
    %c0_i32 = arith.constant 0 : i32
    %c0_i32_0 = arith.constant 0 : i32
    %c0_i32_1 = arith.constant 0 : i32
    return %c0_i32, %c0_i32_0 : i32, i32
  }
  func.func @transform_4(%arg0: i32) -> (i32, i32, i32) {
    %c0_i32 = arith.constant 0 : i32
    %c0_i32_0 = arith.constant 0 : i32
    %c0_i32_1 = arith.constant 0 : i32
    %c0_i32_2 = arith.constant 0 : i32
    return %c0_i32, %c0_i32_0, %c0_i32_1 : i32, i32, i32
  }
  func.func @transform_5(%arg0: i32) -> (i32, i32) {
    %c0_i32 = arith.constant 0 : i32
    %c0_i32_0 = arith.constant 0 : i32
    %c0_i32_1 = arith.constant 0 : i32
    return %c0_i32, %c0_i32_0 : i32, i32
  }
  func.func @transform_6(%arg0: i32) -> (i32, i32, i32) {
    %c0_i32 = arith.constant 0 : i32
    %c0_i32_0 = arith.constant 0 : i32
    %c0_i32_1 = arith.constant 0 : i32
    %c0_i32_2 = arith.constant 0 : i32
    return %c0_i32, %c0_i32_0, %c0_i32_1 : i32, i32, i32
  }
  func.func @transform_7(%arg0: i32) -> (i32, i32) {
    %c0_i32 = arith.constant 0 : i32
    %c0_i32_0 = arith.constant 0 : i32
    %c0_i32_1 = arith.constant 0 : i32
    return %c0_i32, %c0_i32_0 : i32, i32
  }
  func.func @transform_8(%arg0: i32) -> (i32, i32) {
    %c0_i32 = arith.constant 0 : i32
    %c0_i32_0 = arith.constant 0 : i32
    %c0_i32_1 = arith.constant 0 : i32
    return %c0_i32, %c0_i32_0 : i32, i32
  }
  func.func @transform_9(%arg0: i32) -> (i32, i32) {
    %c0_i32 = arith.constant 0 : i32
    %c0_i32_0 = arith.constant 0 : i32
    %c0_i32_1 = arith.constant 0 : i32
    return %c0_i32, %c0_i32_0 : i32, i32
  }
  func.func @transform_10(%arg0: i32) -> (i32, i32, i32) {
    %c0_i32 = arith.constant 0 : i32
    %c0_i32_0 = arith.constant 0 : i32
    %c0_i32_1 = arith.constant 0 : i32
    %c0_i32_2 = arith.constant 0 : i32
    return %c0_i32, %c0_i32_0, %c0_i32_1 : i32, i32, i32
  }
  func.func @transform_11(%arg0: i32) -> (i32, i32) {
    %c0_i32 = arith.constant 0 : i32
    %c0_i32_0 = arith.constant 0 : i32
    %c0_i32_1 = arith.constant 0 : i32
    return %c0_i32, %c0_i32_0 : i32, i32
  }
  func.func @transform_12(%arg0: i32) -> (i32, i32, i32) {
    %c0_i32 = arith.constant 0 : i32
    %c0_i32_0 = arith.constant 0 : i32
    %c0_i32_1 = arith.constant 0 : i32
    %c0_i32_2 = arith.constant 0 : i32
    return %c0_i32, %c0_i32_0, %c0_i32_1 : i32, i32, i32
  }
  func.func @transform_13(%arg0: i32) -> (i32, i32) {
    %c0_i32 = arith.constant 0 : i32
    %c0_i32_0 = arith.constant 0 : i32
    %c0_i32_1 = arith.constant 0 : i32
    return %c0_i32, %c0_i32_0 : i32, i32
  }
  func.func @transform_14(%arg0: i32) -> (i32, i32) {
    %c0_i32 = arith.constant 0 : i32
    %c0_i32_0 = arith.constant 0 : i32
    %c0_i32_1 = arith.constant 0 : i32
    return %c0_i32, %c0_i32_0 : i32, i32
  }
  func.func @transform_15(%arg0: i32) -> (i32, i32) {
    %c0_i32 = arith.constant 0 : i32
    %c0_i32_0 = arith.constant 0 : i32
    %c0_i32_1 = arith.constant 0 : i32
    return %c0_i32, %c0_i32_0 : i32, i32
  }
  func.func @transform_16(%arg0: i32) -> (i32, i32) {
    %c0_i32 = arith.constant 0 : i32
    %c0_i32_0 = arith.constant 0 : i32
    %c0_i32_1 = arith.constant 0 : i32
    return %c0_i32, %c0_i32_0 : i32, i32
  }
  func.func @transform_17(%arg0: i32) -> (i32, i32) {
    %c0_i32 = arith.constant 0 : i32
    %c0_i32_0 = arith.constant 0 : i32
    %c0_i32_1 = arith.constant 0 : i32
    return %c0_i32, %c0_i32_0 : i32, i32
  }
  func.func @transform_18(%arg0: i32) -> (i32, i32) {
    %c0_i32 = arith.constant 0 : i32
    %c0_i32_0 = arith.constant 0 : i32
    %c0_i32_1 = arith.constant 0 : i32
    return %c0_i32, %c0_i32_0 : i32, i32
  }
}

</mosaic_0001>

<llo_original>
// kernel: tpu_custom_call.1
$region0: #{tpu_custom_call.1}
  #allocation0 [shape = 'u32[]', space=smem, size = 0x4, offset = 0x4, fixed_abs, tag = 'smem constant byte address 0x4 - core index']
  #allocation1 [shape = 'u32[72,128]{1,0:T(1,128)}', space=vmem, size = 0x9000, scoped, tag = 'internal scratch']
  %s0 = inlined_call_operand.vmem [shape: s32[16,1], index: 0, kind: input, shape index: {}]
  %s1 = inlined_call_operand.vmem [shape: f32[64,32], index: 1, kind: input, shape index: {}]
  %s2 = inlined_call_operand.vmem [shape: f32[16,32], index: 2, kind: input, shape index: {}]
  %s3 = inlined_call_operand.vmem [shape: f32[64,64], index: 3, kind: input, shape index: {}]
  %s4 = inlined_call_operand.vmem [shape: f32[2,32,96], index: 4, kind: input, shape index: {}]
  %s5 = inlined_call_operand.vmem [shape: f32[2,96], index: 5, kind: input, shape index: {}]
  %s6 = inlined_call_operand.vmem [shape: f32[2,32,32], index: 6, kind: input, shape index: {}]
  %s7 = inlined_call_operand.vmem [shape: f32[2,32], index: 7, kind: input, shape index: {}]
  %s8 = inlined_call_operand.vmem [shape: f32[2,32], index: 8, kind: input, shape index: {}]
  %s9 = inlined_call_operand.vmem [shape: f32[2,32], index: 9, kind: input, shape index: {}]
  %s10 = inlined_call_operand.vmem [shape: f32[2,32,64], index: 10, kind: input, shape index: {}]
  %s11 = inlined_call_operand.hbm [shape: f32[2,64], index: 11, kind: input, shape index: {}]
  %s12 = inlined_call_operand.vmem [shape: f32[2,64,32], index: 12, kind: input, shape index: {}]
  %s13 = inlined_call_operand.vmem [shape: f32[2,32], index: 13, kind: input, shape index: {}]
  %s14 = inlined_call_operand.vmem [shape: f32[2,32], index: 14, kind: input, shape index: {}]
  %s15 = inlined_call_operand.hbm [shape: f32[2,32], index: 15, kind: input, shape index: {}]
  %s16 = inlined_call_operand.vmem [shape: f32[32,64], index: 16, kind: input, shape index: {}]
  %s17 = inlined_call_operand.vmem [shape: f32[1,64], index: 17, kind: input, shape index: {}]
  %s18 = inlined_call_operand.hbm [shape: f32[16,64], index: 18, kind: output, shape index: {}]
  %s19 = sld [smem:[#allocation0]]
  $region90: #{tpu_custom_call.1} parent=0
    _
  %s21 = ssub.s32 1, %s19
  %s22 = scalar_select 0, %s21, %s19
  $region1: #{tpu_custom_call.1} parent=0
    #allocation2 [shape = 'u8[1024]{0}', space=vmem, size = 0x400, scoped, tag = 'input window, operand 11, single buffered']
    #allocation3 [shape = 's32[1]{0}', space=sflag, size = 0x4, scoped, tag = 'scoped memory for tpu_custom_call.1']
    #allocation4 [shape = 's32[1]{0}', space=sflag, size = 0x4, scoped, tag = 'scoped memory for tpu_custom_call.1']
    #allocation5 [shape = 'u8[1024]{0}', space=vmem, size = 0x400, scoped, tag = 'input window, operand 15, single buffered']
    #allocation6 [shape = 's32[1]{0}', space=sflag, size = 0x4, scoped, tag = 'scoped memory for tpu_custom_call.1']
    #allocation7 [shape = 'u8[8192]{0}', space=vmem, size = 0x2000, scoped, tag = 'output window, operand 0, single buffered']
    %23 = vsyncpa [#allocation3], 0
    %24 = vsyncpa [#allocation6], 0
    %25 = vsyncpa [#allocation4], 0
    // Predicated region
    $region2: #{tpu_custom_call.1} parent=1 // pred_check
      _
    $region3: #{tpu_custom_call.1} parent=1 // pred_check_branch
      %27 = sbr.rel (0) target = $region5
    $region4: #{tpu_custom_call.1} parent=1 // pred_region
      _
    $region5: #{tpu_custom_call.1} parent=1 // pred_fallthru
      _
    // Predicated region
    $region6: #{tpu_custom_call.1} parent=1 // pred_check
      _
    $region7: #{tpu_custom_call.1} parent=1 // pred_check_branch
      %29 = sbr.rel (0) target = $region9
    $region8: #{tpu_custom_call.1} parent=1 // pred_region
      _
    $region9: #{tpu_custom_call.1} parent=1 // pred_fallthru
      _
    // Predicated region
    $region10: #{tpu_custom_call.1} parent=1 // pred_check
      _
    $region11: #{tpu_custom_call.1} parent=1 // pred_check_branch
      %31 = sbr.rel (0) target = $region13
    $region12: #{tpu_custom_call.1} parent=1 // pred_region
      _
    $region13: #{tpu_custom_call.1} parent=1 // pred_fallthru
      _
    // Predicated region
    $region14: #{tpu_custom_call.1} parent=1 // pred_check
      _
    $region15: #{tpu_custom_call.1} parent=1 // pred_check_branch
      %33 = sbr.rel (0) target = $region17
    $region16: #{tpu_custom_call.1} parent=1 // pred_region
      _
    $region17: #{tpu_custom_call.1} parent=1 // pred_fallthru
      _
    // Predicated region
    $region18: #{tpu_custom_call.1} parent=1 // pred_check
      _
    $region19: #{tpu_custom_call.1} parent=1 // pred_check_branch
      %35 = sbr.rel (0) target = $region21
    $region20: #{tpu_custom_call.1} parent=1 // pred_region
      _
    $region21: #{tpu_custom_call.1} parent=1 // pred_fallthru
      _
    // Predicated region
    $region22: #{tpu_custom_call.1} parent=1 // pred_check
      _
    $region23: #{tpu_custom_call.1} parent=1 // pred_check_branch
      %37 = sbr.rel (0) target = $region25
    $region24: #{tpu_custom_call.1} parent=1 // pred_region
      _
    $region25: #{tpu_custom_call.1} parent=1 // pred_fallthru
      _
    // Predicated region
    $region26: #{tpu_custom_call.1} parent=1 // pred_check
      _
    $region27: #{tpu_custom_call.1} parent=1 // pred_check_branch
      %39 = sbr.rel (0) target = $region29
    $region28: #{tpu_custom_call.1} parent=1 // pred_region
      _
    $region29: #{tpu_custom_call.1} parent=1 // pred_fallthru
      _
    // Predicated region
    $region30: #{tpu_custom_call.1} parent=1 // pred_check
      _
    $region31: #{tpu_custom_call.1} parent=1 // pred_check_branch
      %41 = sbr.rel (0) target = $region33
    $region32: #{tpu_custom_call.1} parent=1 // pred_region
      _
    $region33: #{tpu_custom_call.1} parent=1 // pred_fallthru
      _
    // Predicated region
    $region34: #{tpu_custom_call.1} parent=1 // pred_check
      _
    $region35: #{tpu_custom_call.1} parent=1 // pred_check_branch
      %43 = sbr.rel (0) target = $region37
    $region36: #{tpu_custom_call.1} parent=1 // pred_region
      _
    $region37: #{tpu_custom_call.1} parent=1 // pred_fallthru
      _
    // Predicated region
    $region38: #{tpu_custom_call.1} parent=1 // pred_check
      _
    $region39: #{tpu_custom_call.1} parent=1 // pred_check_branch
      %45 = sbr.rel (0) target = $region41
    $region40: #{tpu_custom_call.1} parent=1 // pred_region
      _
    $region41: #{tpu_custom_call.1} parent=1 // pred_fallthru
      _
    // Predicated region
    $region42: #{tpu_custom_call.1} parent=1 // pred_check
      _
    $region43: #{tpu_custom_call.1} parent=1 // pred_check_branch
      %47 = sbr.rel (0) target = $region45
    $region44: #{tpu_custom_call.1} parent=1 // pred_region
      _
    $region45: #{tpu_custom_call.1} parent=1 // pred_fallthru
      _
    // Predicated region
    $region46: #{tpu_custom_call.1} parent=1 // pred_check
      _
    $region47: #{tpu_custom_call.1} parent=1 // pred_check_branch
      %49 = sbr.rel (0) target = $region49
    $region48: #{tpu_custom_call.1} parent=1 // pred_region
      %51 = vsyncadd [#allocation3], 0
      %s53 = sshll.u32 %s11, 4
      %s54 = int_to_ptr.hbm [resolvable:$true] %s53
      %s55 = sshll.u32 [#allocation2], 4
      %s56 = int_to_ptr.vmem [resolvable:$true] %s55
      %58 = dma.hbm_to_vmem [thread:$0]  %s54, 32, %s56, [#allocation3]
    $region49: #{tpu_custom_call.1} parent=1 // pred_fallthru
      _
    // Predicated region
    $region50: #{tpu_custom_call.1} parent=1 // pred_check
      _
    $region51: #{tpu_custom_call.1} parent=1 // pred_check_branch
      %60 = sbr.rel (0) target = $region53
    $region52: #{tpu_custom_call.1} parent=1 // pred_region
      _
    $region53: #{tpu_custom_call.1} parent=1 // pred_fallthru
      _
    // Predicated region
    $region54: #{tpu_custom_call.1} parent=1 // pred_check
      _
    $region55: #{tpu_custom_call.1} parent=1 // pred_check_branch
      %62 = sbr.rel (0) target = $region57
    $region56: #{tpu_custom_call.1} parent=1 // pred_region
      _
    $region57: #{tpu_custom_call.1} parent=1 // pred_fallthru
      _
    // Predicated region
    $region58: #{tpu_custom_call.1} parent=1 // pred_check
      _
    $region59: #{tpu_custom_call.1} parent=1 // pred_check_branch
      %64 = sbr.rel (0) target = $region61
    $region60: #{tpu_custom_call.1} parent=1 // pred_region
      _
    $region61: #{tpu_custom_call.1} parent=1 // pred_fallthru
      _
    // Predicated region
    $region62: #{tpu_custom_call.1} parent=1 // pred_check
      _
    $region63: #{tpu_custom_call.1} parent=1 // pred_check_branch
      %66 = sbr.rel (0) target = $region65
    $region64: #{tpu_custom_call.1} parent=1 // pred_region
      %68 = vsyncadd [#allocation6], 0
      %s70 = sshll.u32 %s15, 4
      %s71 = int_to_ptr.hbm [resolvable:$true] %s70
      %s72 = sshll.u32 [#allocation5], 4
      %s73 = int_to_ptr.vmem [resolvable:$true] %s72
      %75 = dma.hbm_to_vmem [thread:$0]  %s71, 32, %s73, [#allocation6]
    $region65: #{tpu_custom_call.1} parent=1 // pred_fallthru
      _
    // Predicated region
    $region66: #{tpu_custom_call.1} parent=1 // pred_check
      _
    $region67: #{tpu_custom_call.1} parent=1 // pred_check_branch
      %77 = sbr.rel (0) target = $region69
    $region68: #{tpu_custom_call.1} parent=1 // pred_region
      _
    $region69: #{tpu_custom_call.1} parent=1 // pred_fallthru
      _
    // Predicated region
    $region70: #{tpu_custom_call.1} parent=1 // pred_check
      _
    $region71: #{tpu_custom_call.1} parent=1 // pred_check_branch
      %79 = sbr.rel (0) target = $region73
    $region72: #{tpu_custom_call.1} parent=1 // pred_region
      _
    $region73: #{tpu_custom_call.1} parent=1 // pred_fallthru
      _
    // Predicated region
    $region74: #{tpu_custom_call.1} parent=1 // pred_check
      _
    $region75: #{tpu_custom_call.1} parent=1 // pred_check_branch
      %81 = sbr.rel (0) target = $region77
    $region76: #{tpu_custom_call.1} parent=1 // pred_region
      %83 = dma.done [#allocation3], 32
    $region77: #{tpu_custom_call.1} parent=1 // pred_fallthru
      _
    // Predicated region
    $region78: #{tpu_custom_call.1} parent=1 // pred_check
      _
    $region79: #{tpu_custom_call.1} parent=1 // pred_check_branch
      %85 = sbr.rel (0) target = $region81
    $region80: #{tpu_custom_call.1} parent=1 // pred_region
      %87 = dma.done [#allocation6], 32
    $region81: #{tpu_custom_call.1} parent=1 // pred_fallthru
      _
    %v88 = vld [vmem:[%s0] sm:$0xff]
    %v89 = vld [vmem:[%s0 + $0x8] sm:$0xff]
    %v90 = vlaneseq
    %v91 = vand.u32 %v90, 127
    %92 = vset.pattern.permute.xlu0 0
    %93 = vperm.xlu0 %92, %v88
    %v94 = vpop.permute.xlu0 %93
    %95 = vset.pattern.permute.xlu0 0
    %96 = vperm.xlu0 %95, %v89
    %v97 = vpop.permute.xlu0 %96
    %vm98 = vcmp.eq.s32.totalorder %v94, %v91
    %vm99 = vcmp.eq.s32.totalorder %v97, %v91
    %v100 = vsel %vm98, 1, 0
    %v101 = vsel %vm99, 1, 0
    %v102 = vcvt.s32.f32 %v100
    %v103 = vcvt.s32.f32 %v101
    %v104 = vld [vmem:[%s1] sm:$0xff]
    %v105 = vld [vmem:[%s1 + $0x8] sm:$0xff]
    %v106 = vld [vmem:[%s1 + $0x10] sm:$0xff]
    %v107 = vld [vmem:[%s1 + $0x18] sm:$0xff]
    %v108 = vld [vmem:[%s1 + $0x20] sm:$0xff]
    %v109 = vld [vmem:[%s1 + $0x28] sm:$0xff]
    %v110 = vld [vmem:[%s1 + $0x30] sm:$0xff]
    %v111 = vld [vmem:[%s1 + $0x38] sm:$0xff]
    %v112 = vld [vmem:[%s2] sm:$0xff]
    %v113 = vld [vmem:[%s2 + $0x8] sm:$0xff]
    %vm114 = vcmask 523264
    %v116 = vsel %vm114, %v102, 0
    %v119 = vsel %vm114, %v103, 0
    %121 = vmatpush.msra.mxu0 0.0
    %122 = vmatpush.msra.mxu0 0.0
    %123 = vmatpush.msra.mxu0 0.0
    %124 = vmatpush.msra.mxu0 0.0
    %125 = vmatpush.msra.mxu0 0.0
    %126 = vmatpush.msra.mxu0 0.0
    %127 = vmatpush.msra.mxu0 0.0
    %128 = vmatpush.msra.mxu0 0.0
    %129 = vmatpush.msra.mxu0 %v111
    %130 = vmatpush.msra.mxu0 %v110
    %131 = vmatpush.msra.mxu0 %v109
    %132 = vmatpush.msra.mxu0 %v108
    %133 = vmatpush.msra.mxu0 %v107
    %134 = vmatpush.msra.mxu0 %v106
    %135 = vmatpush.msra.mxu0 %v105
    %136 = vmatpush.msra.mxu0 %v104
    %137 = vmatmul.f32.gmra.mxu0 %v116
    %v138 = vpop.f32.mrf.mxu0
    %v139 = vadd.f32 %v112, %v138
    %140 = vmatmul.f32.gmra.mxu0 %v119
    %v141 = vpop.f32.mrf.mxu0
    %v142 = vadd.f32 %v113, %v141
    %143 = vdwg.mxu0
    %v144 = vld [vmem:[%s3] sm:$0xff]
    %v145 = vld [vmem:[%s3 + $0x8] sm:$0xff]
    %v146 = vld [vmem:[%s3 + $0x10] sm:$0xff]
    %v147 = vld [vmem:[%s3 + $0x18] sm:$0xff]
    %v148 = vld [vmem:[%s3 + $0x20] sm:$0xff]
    %v149 = vld [vmem:[%s3 + $0x28] sm:$0xff]
    %v150 = vld [vmem:[%s3 + $0x30] sm:$0xff]
    %v151 = vld [vmem:[%s3 + $0x38] sm:$0xff]
    %v152 = vld [vmem:[%s4] sm:$0xff]
    %v153 = vld [vmem:[%s4 + $0x8] sm:$0xff]
    %v154 = vld [vmem:[%s4 + $0x10] sm:$0xff]
    %v155 = vld [vmem:[%s4 + $0x18] sm:$0xff]
    %v156 = vld [vmem:[%s5] sm:$0x1]
    %v157 = vperm.slane %v156, 0
    %vm158 = vcmask 261120
    %v160 = vsel %vm158, %v139, 0
    %v163 = vsel %vm158, %v142, 0
    %165 = vmatpush.msra.mxu0 0.0
    %166 = vmatpush.msra.mxu0 0.0
    %167 = vmatpush.msra.mxu0 0.0
    %168 = vmatpush.msra.mxu0 0.0
    %169 = vmatpush.msra.mxu0 0.0
    %170 = vmatpush.msra.mxu0 0.0
    %171 = vmatpush.msra.mxu0 0.0
    %172 = vmatpush.msra.mxu0 0.0
    %173 = vmatpush.msra.mxu0 0.0
    %174 = vmatpush.msra.mxu0 0.0
    %175 = vmatpush.msra.mxu0 0.0
    %176 = vmatpush.msra.mxu0 0.0
    %177 = vmatpush.msra.mxu0 %v155
    %178 = vmatpush.msra.mxu0 %v154
    %179 = vmatpush.msra.mxu0 %v153
    %180 = vmatpush.msra.mxu0 %v152
    %181 = vmatmul.f32.gmra.mxu0 %v160
    %v182 = vpop.f32.mrf.mxu0
    %v183 = vadd.f32 %v157, %v182
    %184 = vmatmul.f32.gmra.mxu0 %v163
    %v185 = vpop.f32.mrf.mxu0
    %v186 = vadd.f32 %v157, %v185
    %187 = vdwg.mxu0
    %190 = vrot.lane.b32.xlu0 %v183, 120
    %v191 = vpop.permute.xlu0 %190
    %192 = vrot.lane.b32.xlu0 %v186, 120
    %v193 = vpop.permute.xlu0 %192
    %194 = vrot.lane.b32.xlu0 %v183, 112
    %v195 = vpop.permute.xlu0 %194
    %196 = vrot.lane.b32.xlu0 %v186, 112
    %v197 = vpop.permute.xlu0 %196
    %198 = vrot.lane.b32.xlu0 %v183, 104
    %v199 = vpop.permute.xlu0 %198
    %200 = vrot.lane.b32.xlu0 %v186, 104
    %v201 = vpop.permute.xlu0 %200
    %202 = vrot.lane.b32.xlu0 %v183, 96
    %v203 = vpop.permute.xlu0 %202
    %204 = vrot.lane.b32.xlu0 %v186, 96
    %v205 = vpop.permute.xlu0 %204
    %206 = vrot.lane.b32.xlu0 %v191, 96
    %v207 = vpop.permute.xlu0 %206
    %208 = vrot.lane.b32.xlu0 %v193, 96
    %v209 = vpop.permute.xlu0 %208
    %210 = vrot.lane.b32.xlu0 %v195, 96
    %v211 = vpop.permute.xlu0 %210
    %212 = vrot.lane.b32.xlu0 %v197, 96
    %v213 = vpop.permute.xlu0 %212
    %214 = vrot.lane.b32.xlu0 %v199, 96
    %v215 = vpop.permute.xlu0 %214
    %216 = vrot.lane.b32.xlu0 %v201, 96
    %v217 = vpop.permute.xlu0 %216
    %vm218 = vcmask 64512
    %v219 = vsel %vm218, %v183, 0
    %v221 = vsel %vm218, %v186, 0
    %v223 = vsel %vm218, %v191, 0
    %v225 = vsel %vm218, %v193, 0
    %v227 = vsel %vm218, %v195, 0
    %v229 = vsel %vm218, %v197, 0
    %v231 = vsel %vm218, %v199, 0
    %v233 = vsel %vm218, %v201, 0
    %v235 = vsel %vm218, %v203, 0
    %v237 = vsel %vm218, %v205, 0
    %v239 = vsel %vm218, %v207, 0
    %v241 = vsel %vm218, %v209, 0
    %v243 = vsel %vm218, %v211, 0
    %v245 = vsel %vm218, %v213, 0
    %v247 = vsel %vm218, %v215, 0
    %v249 = vsel %vm218, %v217, 0
    %251 = vmatpush.xpose.msra.mxu0 0.0
    %252 = vmatpush.xpose.msra.mxu0 0.0
    %253 = vmatpush.xpose.msra.mxu0 0.0
    %254 = vmatpush.xpose.msra.mxu0 0.0
    %255 = vmatpush.xpose.msra.mxu0 0.0
    %256 = vmatpush.xpose.msra.mxu0 0.0
    %257 = vmatpush.xpose.msra.mxu0 0.0
    %258 = vmatpush.xpose.msra.mxu0 0.0
    %259 = vmatpush.xpose.msra.mxu0 %v249
    %260 = vmatpush.xpose.msra.mxu0 %v247
    %261 = vmatpush.xpose.msra.mxu0 %v245
    %262 = vmatpush.xpose.msra.mxu0 %v243
    %263 = vmatpush.xpose.msra.mxu0 %v241
    %264 = vmatpush.xpose.msra.mxu0 %v239
    %265 = vmatpush.xpose.msra.mxu0 %v237
    %266 = vmatpush.xpose.msra.mxu0 %v235
    %267 = vmatmul.f32.gmra.mxu0 %v219
    %v268 = vpop.f32.mrf.mxu0
    %v269 = vadd.f32 %v144, %v268
    %270 = vmatmul.f32.gmra.mxu0 %v221
    %v271 = vpop.f32.mrf.mxu0
    %v272 = vadd.f32 %v145, %v271
    %273 = vmatmul.f32.gmra.mxu0 %v223
    %v274 = vpop.f32.mrf.mxu0
    %v275 = vadd.f32 %v146, %v274
    %276 = vmatmul.f32.gmra.mxu0 %v225
    %v277 = vpop.f32.mrf.mxu0
    %v278 = vadd.f32 %v147, %v277
    %279 = vmatmul.f32.gmra.mxu0 %v227
    %v280 = vpop.f32.mrf.mxu0
    %v281 = vadd.f32 %v148, %v280
    %282 = vmatmul.f32.gmra.mxu0 %v229
    %v283 = vpop.f32.mrf.mxu0
    %v284 = vadd.f32 %v149, %v283
    %285 = vmatmul.f32.gmra.mxu0 %v231
    %v286 = vpop.f32.mrf.mxu0
    %v287 = vadd.f32 %v150, %v286
    %288 = vmatmul.f32.gmra.mxu0 %v233
    %v289 = vpop.f32.mrf.mxu0
    %v290 = vadd.f32 %v151, %v289
    %291 = vdwg.mxu0
    %v292 = vsel %vm114, %v269, -inf
    %293 = vmax.xlane.f32.xlu0 %v292
    %v294 = vpop.xlane.xlu0 %293
    %v295 = vsel %vm114, %v272, -inf
    %296 = vmax.xlane.f32.xlu0 %v295
    %v297 = vpop.xlane.xlu0 %296
    %v298 = vsel %vm114, %v275, -inf
    %299 = vmax.xlane.f32.xlu0 %v298
    %v300 = vpop.xlane.xlu0 %299
    %v301 = vsel %vm114, %v278, -inf
    %302 = vmax.xlane.f32.xlu0 %v301
    %v303 = vpop.xlane.xlu0 %302
    %v304 = vsel %vm114, %v281, -inf
    %305 = vmax.xlane.f32.xlu0 %v304
    %v306 = vpop.xlane.xlu0 %305
    %v307 = vsel %vm114, %v284, -inf
    %308 = vmax.xlane.f32.xlu0 %v307
    %v309 = vpop.xlane.xlu0 %308
    %v310 = vsel %vm114, %v287, -inf
    %311 = vmax.xlane.f32.xlu0 %v310
    %v312 = vpop.xlane.xlu0 %311
    %v313 = vsel %vm114, %v290, -inf
    %314 = vmax.xlane.f32.xlu0 %v313
    %v315 = vpop.xlane.xlu0 %314
    %v316 = vsub.f32 %v269, %v294
    %v317 = vsub.f32 %v272, %v297
    %v318 = vsub.f32 %v275, %v300
    %v319 = vsub.f32 %v278, %v303
    %v320 = vsub.f32 %v281, %v306
    %v321 = vsub.f32 %v284, %v309
    %v322 = vsub.f32 %v287, %v312
    %v323 = vsub.f32 %v290, %v315
    %v324 = vmul.f32 %v316, 1.442695
    %v325 = vpow.pop %v324
    %v326 = vmul.f32 %v317, 1.442695
    %v327 = vpow.pop %v326
    %v328 = vmul.f32 %v318, 1.442695
    %v329 = vpow.pop %v328
    %v330 = vmul.f32 %v319, 1.442695
    %v331 = vpow.pop %v330
    %v332 = vmul.f32 %v320, 1.442695
    %v333 = vpow.pop %v332
    %v334 = vmul.f32 %v321, 1.442695
    %v335 = vpow.pop %v334
    %v336 = vmul.f32 %v322, 1.442695
    %v337 = vpow.pop %v336
    %v338 = vmul.f32 %v323, 1.442695
    %v339 = vpow.pop %v338
    %v340 = vsel %vm114, %v325, 0.0
    %341 = vadd.xlane.f32.xlu0 %v340
    %v342 = vpop.xlane.xlu0 %341
    %v343 = vsel %vm114, %v327, 0.0
    %344 = vadd.xlane.f32.xlu0 %v343
    %v345 = vpop.xlane.xlu0 %344
    %v346 = vsel %vm114, %v329, 0.0
    %347 = vadd.xlane.f32.xlu0 %v346
    %v348 = vpop.xlane.xlu0 %347
    %v349 = vsel %vm114, %v331, 0.0
    %350 = vadd.xlane.f32.xlu0 %v349
    %v351 = vpop.xlane.xlu0 %350
    %v352 = vsel %vm114, %v333, 0.0
    %353 = vadd.xlane.f32.xlu0 %v352
    %v354 = vpop.xlane.xlu0 %353
    %v355 = vsel %vm114, %v335, 0.0
    %356 = vadd.xlane.f32.xlu0 %v355
    %v357 = vpop.xlane.xlu0 %356
    %v358 = vsel %vm114, %v337, 0.0
    %359 = vadd.xlane.f32.xlu0 %v358
    %v360 = vpop.xlane.xlu0 %359
    %v361 = vsel %vm114, %v339, 0.0
    %362 = vadd.xlane.f32.xlu0 %v361
    %v363 = vpop.xlane.xlu0 %362
    %v364 = vrcp.pop %v342
    %v365 = vrcp.pop %v345
    %v366 = vrcp.pop %v348
    %v367 = vrcp.pop %v351
    %v368 = vrcp.pop %v354
    %v369 = vrcp.pop %v357
    %v370 = vrcp.pop %v360
    %v371 = vrcp.pop %v363
    %v372 = vmul.f32 %v325, %v364
    %v373 = vmul.f32 %v327, %v365
    %v374 = vmul.f32 %v329, %v366
    %v375 = vmul.f32 %v331, %v367
    %v376 = vmul.f32 %v333, %v368
    %v377 = vmul.f32 %v335, %v369
    %v378 = vmul.f32 %v337, %v370
    %v379 = vmul.f32 %v339, %v371
    %380 = vrot.lane.b32.xlu0 %v183, 64
    %v381 = vpop.permute.xlu0 %380
    %382 = vrot.lane.b32.xlu0 %v186, 64
    %v383 = vpop.permute.xlu0 %382
    %384 = vrot.lane.b32.xlu0 %v191, 64
    %v385 = vpop.permute.xlu0 %384
    %386 = vrot.lane.b32.xlu0 %v193, 64
    %v387 = vpop.permute.xlu0 %386
    %388 = vrot.lane.b32.xlu0 %v195, 64
    %v389 = vpop.permute.xlu0 %388
    %390 = vrot.lane.b32.xlu0 %v197, 64
    %v391 = vpop.permute.xlu0 %390
    %392 = vrot.lane.b32.xlu0 %v199, 64
    %v393 = vpop.permute.xlu0 %392
    %394 = vrot.lane.b32.xlu0 %v201, 64
    %v395 = vpop.permute.xlu0 %394
    %v405 = vsel %vm114, %v372, 0
    %v408 = vsel %vm114, %v373, 0
    %v411 = vsel %vm114, %v374, 0
    %v414 = vsel %vm114, %v375, 0
    %v417 = vsel %vm114, %v376, 0
    %v420 = vsel %vm114, %v377, 0
    %v423 = vsel %vm114, %v378, 0
    %v426 = vsel %vm114, %v379, 0
    %428 = vmatpush.msra.mxu0 0.0
    %429 = vmatpush.msra.mxu0 0.0
    %430 = vmatpush.msra.mxu0 0.0
    %431 = vmatpush.msra.mxu0 0.0
    %432 = vmatpush.msra.mxu0 0.0
    %433 = vmatpush.msra.mxu0 0.0
    %434 = vmatpush.msra.mxu0 0.0
    %435 = vmatpush.msra.mxu0 0.0
    %436 = vmatpush.msra.mxu0 %v395
    %437 = vmatpush.msra.mxu0 %v393
    %438 = vmatpush.msra.mxu0 %v391
    %439 = vmatpush.msra.mxu0 %v389
    %440 = vmatpush.msra.mxu0 %v387
    %441 = vmatpush.msra.mxu0 %v385
    %442 = vmatpush.msra.mxu0 %v383
    %443 = vmatpush.msra.mxu0 %v381
    %444 = vmatmul.f32.gmra.mxu0 %v405
    %v445 = vpop.f32.mrf.mxu0
    %v446 = vadd.f32 0.0, %v445
    %447 = vmatmul.f32.gmra.mxu0 %v408
    %v448 = vpop.f32.mrf.mxu0
    %v449 = vadd.f32 0.0, %v448
    %450 = vmatmul.f32.gmra.mxu0 %v411
    %v451 = vpop.f32.mrf.mxu0
    %v452 = vadd.f32 0.0, %v451
    %453 = vmatmul.f32.gmra.mxu0 %v414
    %v454 = vpop.f32.mrf.mxu0
    %v455 = vadd.f32 0.0, %v454
    %456 = vmatmul.f32.gmra.mxu0 %v417
    %v457 = vpop.f32.mrf.mxu0
    %v458 = vadd.f32 0.0, %v457
    %459 = vmatmul.f32.gmra.mxu0 %v420
    %v460 = vpop.f32.mrf.mxu0
    %v461 = vadd.f32 0.0, %v460
    %462 = vmatmul.f32.gmra.mxu0 %v423
    %v463 = vpop.f32.mrf.mxu0
    %v464 = vadd.f32 0.0, %v463
    %465 = vmatmul.f32.gmra.mxu0 %v426
    %v466 = vpop.f32.mrf.mxu0
    %v467 = vadd.f32 0.0, %v466
    %468 = vdwg.mxu0
    %471 = vrot.lane.b32.xlu0 %v452, 8
    %v472 = vpop.permute.xlu0 %471
    %473 = vrot.lane.b32.xlu0 %v455, 8
    %v474 = vpop.permute.xlu0 %473
    %479 = vrot.lane.b32.xlu0 %v458, 16
    %v480 = vpop.permute.xlu0 %479
    %481 = vrot.lane.b32.xlu0 %v461, 16
    %v482 = vpop.permute.xlu0 %481
    %487 = vrot.lane.b32.xlu0 %v464, 24
    %v488 = vpop.permute.xlu0 %487
    %489 = vrot.lane.b32.xlu0 %v467, 24
    %v490 = vpop.permute.xlu0 %489
    %v493 = vsel %vm218, %v446, %v472
    %v494 = vsel %vm218, %v449, %v474
    %vm495 = vcmask 130048
    %v496 = vsel %vm495, %v493, %v480
    %v497 = vsel %vm495, %v494, %v482
    %vm498 = vcmask 195584
    %v499 = vsel %vm498, %v496, %v488
    %v500 = vsel %vm498, %v497, %v490
    %v501 = vld [vmem:[%s6] sm:$0xff]
    %v502 = vld [vmem:[%s6 + $0x8] sm:$0xff]
    %v503 = vld [vmem:[%s6 + $0x10] sm:$0xff]
    %v504 = vld [vmem:[%s6 + $0x18] sm:$0xff]
    %v505 = vld [vmem:[%s7] sm:$0x1]
    %v506 = vperm.slane %v505, 0
    %v508 = vsel %vm158, %v499, 0
    %v511 = vsel %vm158, %v500, 0
    %513 = vmatpush.msra.mxu0 0.0
    %514 = vmatpush.msra.mxu0 0.0
    %515 = vmatpush.msra.mxu0 0.0
    %516 = vmatpush.msra.mxu0 0.0
    %517 = vmatpush.msra.mxu0 0.0
    %518 = vmatpush.msra.mxu0 0.0
    %519 = vmatpush.msra.mxu0 0.0
    %520 = vmatpush.msra.mxu0 0.0
    %521 = vmatpush.msra.mxu0 0.0
    %522 = vmatpush.msra.mxu0 0.0
    %523 = vmatpush.msra.mxu0 0.0
    %524 = vmatpush.msra.mxu0 0.0
    %525 = vmatpush.msra.mxu0 %v504
    %526 = vmatpush.msra.mxu0 %v503
    %527 = vmatpush.msra.mxu0 %v502
    %528 = vmatpush.msra.mxu0 %v501
    %529 = vmatmul.f32.gmra.mxu0 %v508
    %v530 = vpop.f32.mrf.mxu0
    %v531 = vadd.f32 %v506, %v530
    %532 = vmatmul.f32.gmra.mxu0 %v511
    %v533 = vpop.f32.mrf.mxu0
    %v534 = vadd.f32 %v506, %v533
    %535 = vdwg.mxu0
    %v536 = vadd.f32 %v139, %v531
    %v537 = vadd.f32 %v142, %v534
    %v538 = vld [vmem:[%s8] sm:$0x1]
    %v539 = vld [vmem:[%s9] sm:$0x1]
    %v540 = vsel %vm158, %v536, 0.0
    %541 = vadd.xlane.f32.xlu0 %v540
    %v542 = vpop.xlane.xlu0 %541
    %v543 = vsel %vm158, %v537, 0.0
    %544 = vadd.xlane.f32.xlu0 %v543
    %v545 = vpop.xlane.xlu0 %544
    %v546 = vrcp.pop 32.0
    %v547 = vmul.f32 32.0, %v546
    %v548 = vsub.f32 1.0, %v547
    %v549 = vmul.f32 %v546, %v548
    %v550 = vadd.f32 %v546, %v549
    %vm551 = vweird.f32 %v546
    %v552 = vsel %vm551, %v546, %v550
    %v553 = vmul.f32 %v542, %v552
    %v554 = vmul.f32 %v545, %v552
    %v555 = vsub.f32 %v536, %v553
    %v556 = vsub.f32 %v537, %v554
    %v557 = vmul.f32 %v555, %v555
    %v558 = vmul.f32 %v556, %v556
    %v559 = vsel %vm158, %v557, 0.0
    %560 = vadd.xlane.f32.xlu0 %v559
    %v561 = vpop.xlane.xlu0 %560
    %v562 = vsel %vm158, %v558, 0.0
    %563 = vadd.xlane.f32.xlu0 %v562
    %v564 = vpop.xlane.xlu0 %563
    %v565 = vmul.f32 %v561, %v552
    %v566 = vmul.f32 %v564, %v552
    %v567 = vadd.f32 %v565, 1e-05
    %v568 = vadd.f32 %v566, 1e-05
    %v569 = vrsqrt.pop %v567
    %v570 = vmul.f32 %v569, %v567
    %v571 = vmul.f32 %v570, %v569
    %v572 = vmul.f32 0.5, %v571
    %v573 = vsub.f32 1.5, %v572
    %v574 = vmul.f32 %v569, %v573
    %vm575 = vweird.f32 %v567
    %vm576 = vweird.f32 %v569
    %vm577 = vmor %vm575, %vm576
    %v578 = vsel %vm577, %v569, %v574
    %v579 = vrsqrt.pop %v568
    %v580 = vmul.f32 %v579, %v568
    %v581 = vmul.f32 %v580, %v579
    %v582 = vmul.f32 0.5, %v581
    %v583 = vsub.f32 1.5, %v582
    %v584 = vmul.f32 %v579, %v583
    %vm585 = vweird.f32 %v568
    %vm586 = vweird.f32 %v579
    %vm587 = vmor %vm585, %vm586
    %v588 = vsel %vm587, %v579, %v584
    %v589 = vmul.f32 %v555, %v578
    %v590 = vmul.f32 %v556, %v588
    %v591 = vperm.slane %v538, 0
    %v592 = vmul.f32 %v589, %v591
    %v593 = vmul.f32 %v590, %v591
    %v594 = vperm.slane %v539, 0
    %v595 = vadd.f32 %v592, %v594
    %v596 = vadd.f32 %v593, %v594
    %v597 = vld [vmem:[%s10] sm:$0xff]
    %v598 = vld [vmem:[%s10 + $0x8] sm:$0xff]
    %v599 = vld [vmem:[%s10 + $0x10] sm:$0xff]
    %v600 = vld [vmem:[%s10 + $0x18] sm:$0xff]
    %v601 = vld [vmem:[#allocation2] sm:$0x1]
    %v602 = vperm.slane %v601, 0
    %v604 = vsel %vm158, %v595, 0
    %v607 = vsel %vm158, %v596, 0
    %609 = vmatpush.msra.mxu0 0.0
    %610 = vmatpush.msra.mxu0 0.0
    %611 = vmatpush.msra.mxu0 0.0
    %612 = vmatpush.msra.mxu0 0.0
    %613 = vmatpush.msra.mxu0 0.0
    %614 = vmatpush.msra.mxu0 0.0
    %615 = vmatpush.msra.mxu0 0.0
    %616 = vmatpush.msra.mxu0 0.0
    %617 = vmatpush.msra.mxu0 0.0
    %618 = vmatpush.msra.mxu0 0.0
    %619 = vmatpush.msra.mxu0 0.0
    %620 = vmatpush.msra.mxu0 0.0
    %621 = vmatpush.msra.mxu0 %v600
    %622 = vmatpush.msra.mxu0 %v599
    %623 = vmatpush.msra.mxu0 %v598
    %624 = vmatpush.msra.mxu0 %v597
    %625 = vmatmul.f32.gmra.mxu0 %v604
    %v626 = vpop.f32.mrf.mxu0
    %v627 = vadd.f32 %v602, %v626
    %628 = vmatmul.f32.gmra.mxu0 %v607
    %v629 = vpop.f32.mrf.mxu0
    %v630 = vadd.f32 %v602, %v629
    %631 = vdwg.mxu0
    %v632 = vmax.f32 %v627, 0.0
    %v633 = vmax.f32 %v630, 0.0
    %v634 = vld [vmem:[%s12] sm:$0xff]
    %v635 = vld [vmem:[%s12 + $0x8] sm:$0xff]
    %v636 = vld [vmem:[%s12 + $0x10] sm:$0xff]
    %v637 = vld [vmem:[%s12 + $0x18] sm:$0xff]
    %v638 = vld [vmem:[%s12 + $0x20] sm:$0xff]
    %v639 = vld [vmem:[%s12 + $0x28] sm:$0xff]
    %v640 = vld [vmem:[%s12 + $0x30] sm:$0xff]
    %v641 = vld [vmem:[%s12 + $0x38] sm:$0xff]
    %v642 = vld [vmem:[%s13] sm:$0x1]
    %v643 = vperm.slane %v642, 0
    %v645 = vsel %vm114, %v632, 0
    %v648 = vsel %vm114, %v633, 0
    %650 = vmatpush.msra.mxu0 0.0
    %651 = vmatpush.msra.mxu0 0.0
    %652 = vmatpush.msra.mxu0 0.0
    %653 = vmatpush.msra.mxu0 0.0
    %654 = vmatpush.msra.mxu0 0.0
    %655 = vmatpush.msra.mxu0 0.0
    %656 = vmatpush.msra.mxu0 0.0
    %657 = vmatpush.msra.mxu0 0.0
    %658 = vmatpush.msra.mxu0 %v641
    %659 = vmatpush.msra.mxu0 %v640
    %660 = vmatpush.msra.mxu0 %v639
    %661 = vmatpush.msra.mxu0 %v638
    %662 = vmatpush.msra.mxu0 %v637
    %663 = vmatpush.msra.mxu0 %v636
    %664 = vmatpush.msra.mxu0 %v635
    %665 = vmatpush.msra.mxu0 %v634
    %666 = vmatmul.f32.gmra.mxu0 %v645
    %v667 = vpop.f32.mrf.mxu0
    %v668 = vadd.f32 %v643, %v667
    %669 = vmatmul.f32.gmra.mxu0 %v648
    %v670 = vpop.f32.mrf.mxu0
    %v671 = vadd.f32 %v643, %v670
    %672 = vdwg.mxu0
    %v673 = vadd.f32 %v595, %v668
    %v674 = vadd.f32 %v596, %v671
    %v675 = vld [vmem:[%s14] sm:$0x1]
    %v676 = vld [vmem:[#allocation5] sm:$0x1]
    %v677 = vsel %vm158, %v673, 0.0
    %678 = vadd.xlane.f32.xlu0 %v677
    %v679 = vpop.xlane.xlu0 %678
    %v680 = vsel %vm158, %v674, 0.0
    %681 = vadd.xlane.f32.xlu0 %v680
    %v682 = vpop.xlane.xlu0 %681
    %v683 = vmul.f32 %v679, %v552
    %v684 = vmul.f32 %v682, %v552
    %v685 = vsub.f32 %v673, %v683
    %v686 = vsub.f32 %v674, %v684
    %v687 = vmul.f32 %v685, %v685
    %v688 = vmul.f32 %v686, %v686
    %v689 = vsel %vm158, %v687, 0.0
    %690 = vadd.xlane.f32.xlu0 %v689
    %v691 = vpop.xlane.xlu0 %690
    %v692 = vsel %vm158, %v688, 0.0
    %693 = vadd.xlane.f32.xlu0 %v692
    %v694 = vpop.xlane.xlu0 %693
    %v695 = vmul.f32 %v691, %v552
    %v696 = vmul.f32 %v694, %v552
    %v697 = vadd.f32 %v695, 1e-05
    %v698 = vadd.f32 %v696, 1e-05
    %v699 = vrsqrt.pop %v697
    %v700 = vmul.f32 %v699, %v697
    %v701 = vmul.f32 %v700, %v699
    %v702 = vmul.f32 0.5, %v701
    %v703 = vsub.f32 1.5, %v702
    %v704 = vmul.f32 %v699, %v703
    %vm705 = vweird.f32 %v697
    %vm706 = vweird.f32 %v699
    %vm707 = vmor %vm705, %vm706
    %v708 = vsel %vm707, %v699, %v704
    %v709 = vrsqrt.pop %v698
    %v710 = vmul.f32 %v709, %v698
    %v711 = vmul.f32 %v710, %v709
    %v712 = vmul.f32 0.5, %v711
    %v713 = vsub.f32 1.5, %v712
    %v714 = vmul.f32 %v709, %v713
    %vm715 = vweird.f32 %v698
    %vm716 = vweird.f32 %v709
    %vm717 = vmor %vm715, %vm716
    %v718 = vsel %vm717, %v709, %v714
    %v719 = vmul.f32 %v685, %v708
    %v720 = vmul.f32 %v686, %v718
    %v721 = vperm.slane %v675, 0
    %v722 = vmul.f32 %v719, %v721
    %v723 = vmul.f32 %v720, %v721
    %v724 = vperm.slane %v676, 0
    %v725 = vadd.f32 %v722, %v724
    %v726 = vadd.f32 %v723, %v724
    %s727 = scalar_lea.vmem %s4, 32
    %v728 = vld [vmem:[%s727] sm:$0xff]
    %v729 = vld [vmem:[%s727 + $0x8] sm:$0xff]
    %v730 = vld [vmem:[%s727 + $0x10] sm:$0xff]
    %v731 = vld [vmem:[%s727 + $0x18] sm:$0xff]
    %v732 = vld [vmem:[%s5 + $0x1] sm:$0x1]
    %v733 = vperm.slane %v732, 0
    %v735 = vsel %vm158, %v725, 0
    %v738 = vsel %vm158, %v726, 0
    %740 = vmatpush.msra.mxu0 0.0
    %741 = vmatpush.msra.mxu0 0.0
    %742 = vmatpush.msra.mxu0 0.0
    %743 = vmatpush.msra.mxu0 0.0
    %744 = vmatpush.msra.mxu0 0.0
    %745 = vmatpush.msra.mxu0 0.0
    %746 = vmatpush.msra.mxu0 0.0
    %747 = vmatpush.msra.mxu0 0.0
    %748 = vmatpush.msra.mxu0 0.0
    %749 = vmatpush.msra.mxu0 0.0
    %750 = vmatpush.msra.mxu0 0.0
    %751 = vmatpush.msra.mxu0 0.0
    %752 = vmatpush.msra.mxu0 %v731
    %753 = vmatpush.msra.mxu0 %v730
    %754 = vmatpush.msra.mxu0 %v729
    %755 = vmatpush.msra.mxu0 %v728
    %756 = vmatmul.f32.gmra.mxu0 %v735
    %v757 = vpop.f32.mrf.mxu0
    %v758 = vadd.f32 %v733, %v757
    %759 = vmatmul.f32.gmra.mxu0 %v738
    %v760 = vpop.f32.mrf.mxu0
    %v761 = vadd.f32 %v733, %v760
    %762 = vdwg.mxu0
    %765 = vrot.lane.b32.xlu0 %v758, 120
    %v766 = vpop.permute.xlu0 %765
    %767 = vrot.lane.b32.xlu0 %v761, 120
    %v768 = vpop.permute.xlu0 %767
    %769 = vrot.lane.b32.xlu0 %v758, 112
    %v770 = vpop.permute.xlu0 %769
    %771 = vrot.lane.b32.xlu0 %v761, 112
    %v772 = vpop.permute.xlu0 %771
    %773 = vrot.lane.b32.xlu0 %v758, 104
    %v774 = vpop.permute.xlu0 %773
    %775 = vrot.lane.b32.xlu0 %v761, 104
    %v776 = vpop.permute.xlu0 %775
    %777 = vrot.lane.b32.xlu0 %v758, 96
    %v778 = vpop.permute.xlu0 %777
    %779 = vrot.lane.b32.xlu0 %v761, 96
    %v780 = vpop.permute.xlu0 %779
    %781 = vrot.lane.b32.xlu0 %v766, 96
    %v782 = vpop.permute.xlu0 %781
    %783 = vrot.lane.b32.xlu0 %v768, 96
    %v784 = vpop.permute.xlu0 %783
    %785 = vrot.lane.b32.xlu0 %v770, 96
    %v786 = vpop.permute.xlu0 %785
    %787 = vrot.lane.b32.xlu0 %v772, 96
    %v788 = vpop.permute.xlu0 %787
    %789 = vrot.lane.b32.xlu0 %v774, 96
    %v790 = vpop.permute.xlu0 %789
    %791 = vrot.lane.b32.xlu0 %v776, 96
    %v792 = vpop.permute.xlu0 %791
    %v793 = vsel %vm218, %v758, 0
    %v795 = vsel %vm218, %v761, 0
    %v797 = vsel %vm218, %v766, 0
    %v799 = vsel %vm218, %v768, 0
    %v801 = vsel %vm218, %v770, 0
    %v803 = vsel %vm218, %v772, 0
    %v805 = vsel %vm218, %v774, 0
    %v807 = vsel %vm218, %v776, 0
    %v809 = vsel %vm218, %v778, 0
    %v811 = vsel %vm218, %v780, 0
    %v813 = vsel %vm218, %v782, 0
    %v815 = vsel %vm218, %v784, 0
    %v817 = vsel %vm218, %v786, 0
    %v819 = vsel %vm218, %v788, 0
    %v821 = vsel %vm218, %v790, 0
    %v823 = vsel %vm218, %v792, 0
    %825 = vmatpush.xpose.msra.mxu0 0.0
    %826 = vmatpush.xpose.msra.mxu0 0.0
    %827 = vmatpush.xpose.msra.mxu0 0.0
    %828 = vmatpush.xpose.msra.mxu0 0.0
    %829 = vmatpush.xpose.msra.mxu0 0.0
    %830 = vmatpush.xpose.msra.mxu0 0.0
    %831 = vmatpush.xpose.msra.mxu0 0.0
    %832 = vmatpush.xpose.msra.mxu0 0.0
    %833 = vmatpush.xpose.msra.mxu0 %v823
    %834 = vmatpush.xpose.msra.mxu0 %v821
    %835 = vmatpush.xpose.msra.mxu0 %v819
    %836 = vmatpush.xpose.msra.mxu0 %v817
    %837 = vmatpush.xpose.msra.mxu0 %v815
    %838 = vmatpush.xpose.msra.mxu0 %v813
    %839 = vmatpush.xpose.msra.mxu0 %v811
    %840 = vmatpush.xpose.msra.mxu0 %v809
    %841 = vmatmul.f32.gmra.mxu0 %v793
    %v842 = vpop.f32.mrf.mxu0
    %v843 = vadd.f32 %v144, %v842
    %844 = vmatmul.f32.gmra.mxu0 %v795
    %v845 = vpop.f32.mrf.mxu0
    %v846 = vadd.f32 %v145, %v845
    %847 = vmatmul.f32.gmra.mxu0 %v797
    %v848 = vpop.f32.mrf.mxu0
    %v849 = vadd.f32 %v146, %v848
    %850 = vmatmul.f32.gmra.mxu0 %v799
    %v851 = vpop.f32.mrf.mxu0
    %v852 = vadd.f32 %v147, %v851
    %853 = vmatmul.f32.gmra.mxu0 %v801
    %v854 = vpop.f32.mrf.mxu0
    %v855 = vadd.f32 %v148, %v854
    %856 = vmatmul.f32.gmra.mxu0 %v803
    %v857 = vpop.f32.mrf.mxu0
    %v858 = vadd.f32 %v149, %v857
    %859 = vmatmul.f32.gmra.mxu0 %v805
    %v860 = vpop.f32.mrf.mxu0
    %v861 = vadd.f32 %v150, %v860
    %862 = vmatmul.f32.gmra.mxu0 %v807
    %v863 = vpop.f32.mrf.mxu0
    %v864 = vadd.f32 %v151, %v863
    %865 = vdwg.mxu0
    %v866 = vsel %vm114, %v843, -inf
    %867 = vmax.xlane.f32.xlu0 %v866
    %v868 = vpop.xlane.xlu0 %867
    %v869 = vsel %vm114, %v846, -inf
    %870 = vmax.xlane.f32.xlu0 %v869
    %v871 = vpop.xlane.xlu0 %870
    %v872 = vsel %vm114, %v849, -inf
    %873 = vmax.xlane.f32.xlu0 %v872
    %v874 = vpop.xlane.xlu0 %873
    %v875 = vsel %vm114, %v852, -inf
    %876 = vmax.xlane.f32.xlu0 %v875
    %v877 = vpop.xlane.xlu0 %876
    %v878 = vsel %vm114, %v855, -inf
    %879 = vmax.xlane.f32.xlu0 %v878
    %v880 = vpop.xlane.xlu0 %879
    %v881 = vsel %vm114, %v858, -inf
    %882 = vmax.xlane.f32.xlu0 %v881
    %v883 = vpop.xlane.xlu0 %882
    %v884 = vsel %vm114, %v861, -inf
    %885 = vmax.xlane.f32.xlu0 %v884
    %v886 = vpop.xlane.xlu0 %885
    %v887 = vsel %vm114, %v864, -inf
    %888 = vmax.xlane.f32.xlu0 %v887
    %v889 = vpop.xlane.xlu0 %888
    %v890 = vsub.f32 %v843, %v868
    %v891 = vsub.f32 %v846, %v871
    %v892 = vsub.f32 %v849, %v874
    %v893 = vsub.f32 %v852, %v877
    %v894 = vsub.f32 %v855, %v880
    %v895 = vsub.f32 %v858, %v883
    %v896 = vsub.f32 %v861, %v886
    %v897 = vsub.f32 %v864, %v889
    %v898 = vmul.f32 %v890, 1.442695
    %v899 = vpow.pop %v898
    %v900 = vmul.f32 %v891, 1.442695
    %v901 = vpow.pop %v900
    %v902 = vmul.f32 %v892, 1.442695
    %v903 = vpow.pop %v902
    %v904 = vmul.f32 %v893, 1.442695
    %v905 = vpow.pop %v904
    %v906 = vmul.f32 %v894, 1.442695
    %v907 = vpow.pop %v906
    %v908 = vmul.f32 %v895, 1.442695
    %v909 = vpow.pop %v908
    %v910 = vmul.f32 %v896, 1.442695
    %v911 = vpow.pop %v910
    %v912 = vmul.f32 %v897, 1.442695
    %v913 = vpow.pop %v912
    %v914 = vsel %vm114, %v899, 0.0
    %915 = vadd.xlane.f32.xlu0 %v914
    %v916 = vpop.xlane.xlu0 %915
    %v917 = vsel %vm114, %v901, 0.0
    %918 = vadd.xlane.f32.xlu0 %v917
    %v919 = vpop.xlane.xlu0 %918
    %v920 = vsel %vm114, %v903, 0.0
    %921 = vadd.xlane.f32.xlu0 %v920
    %v922 = vpop.xlane.xlu0 %921
    %v923 = vsel %vm114, %v905, 0.0
    %924 = vadd.xlane.f32.xlu0 %v923
    %v925 = vpop.xlane.xlu0 %924
    %v926 = vsel %vm114, %v907, 0.0
    %927 = vadd.xlane.f32.xlu0 %v926
    %v928 = vpop.xlane.xlu0 %927
    %v929 = vsel %vm114, %v909, 0.0
    %930 = vadd.xlane.f32.xlu0 %v929
    %v931 = vpop.xlane.xlu0 %930
    %v932 = vsel %vm114, %v911, 0.0
    %933 = vadd.xlane.f32.xlu0 %v932
    %v934 = vpop.xlane.xlu0 %933
    %v935 = vsel %vm114, %v913, 0.0
    %936 = vadd.xlane.f32.xlu0 %v935
    %v937 = vpop.xlane.xlu0 %936
    %v938 = vrcp.pop %v916
    %v939 = vrcp.pop %v919
    %v940 = vrcp.pop %v922
    %v941 = vrcp.pop %v925
    %v942 = vrcp.pop %v928
    %v943 = vrcp.pop %v931
    %v944 = vrcp.pop %v934
    %v945 = vrcp.pop %v937
    %v946 = vmul.f32 %v899, %v938
    %v947 = vmul.f32 %v901, %v939
    %v948 = vmul.f32 %v903, %v940
    %v949 = vmul.f32 %v905, %v941
    %v950 = vmul.f32 %v907, %v942
    %v951 = vmul.f32 %v909, %v943
    %v952 = vmul.f32 %v911, %v944
    %v953 = vmul.f32 %v913, %v945
    %954 = vrot.lane.b32.xlu0 %v758, 64
    %v955 = vpop.permute.xlu0 %954
    %956 = vrot.lane.b32.xlu0 %v761, 64
    %v957 = vpop.permute.xlu0 %956
    %958 = vrot.lane.b32.xlu0 %v766, 64
    %v959 = vpop.permute.xlu0 %958
    %960 = vrot.lane.b32.xlu0 %v768, 64
    %v961 = vpop.permute.xlu0 %960
    %962 = vrot.lane.b32.xlu0 %v770, 64
    %v963 = vpop.permute.xlu0 %962
    %964 = vrot.lane.b32.xlu0 %v772, 64
    %v965 = vpop.permute.xlu0 %964
    %966 = vrot.lane.b32.xlu0 %v774, 64
    %v967 = vpop.permute.xlu0 %966
    %968 = vrot.lane.b32.xlu0 %v776, 64
    %v969 = vpop.permute.xlu0 %968
    %v979 = vsel %vm114, %v946, 0
    %v982 = vsel %vm114, %v947, 0
    %v985 = vsel %vm114, %v948, 0
    %v988 = vsel %vm114, %v949, 0
    %v991 = vsel %vm114, %v950, 0
    %v994 = vsel %vm114, %v951, 0
    %v997 = vsel %vm114, %v952, 0
    %v1000 = vsel %vm114, %v953, 0
    %1002 = vmatpush.msra.mxu0 0.0
    %1003 = vmatpush.msra.mxu0 0.0
    %1004 = vmatpush.msra.mxu0 0.0
    %1005 = vmatpush.msra.mxu0 0.0
    %1006 = vmatpush.msra.mxu0 0.0
    %1007 = vmatpush.msra.mxu0 0.0
    %1008 = vmatpush.msra.mxu0 0.0
    %1009 = vmatpush.msra.mxu0 0.0
    %1010 = vmatpush.msra.mxu0 %v969
    %1011 = vmatpush.msra.mxu0 %v967
    %1012 = vmatpush.msra.mxu0 %v965
    %1013 = vmatpush.msra.mxu0 %v963
    %1014 = vmatpush.msra.mxu0 %v961
    %1015 = vmatpush.msra.mxu0 %v959
    %1016 = vmatpush.msra.mxu0 %v957
    %1017 = vmatpush.msra.mxu0 %v955
    %1018 = vmatmul.f32.gmra.mxu0 %v979
    %v1019 = vpop.f32.mrf.mxu0
    %v1020 = vadd.f32 0.0, %v1019
    %1021 = vmatmul.f32.gmra.mxu0 %v982
    %v1022 = vpop.f32.mrf.mxu0
    %v1023 = vadd.f32 0.0, %v1022
    %1024 = vmatmul.f32.gmra.mxu0 %v985
    %v1025 = vpop.f32.mrf.mxu0
    %v1026 = vadd.f32 0.0, %v1025
    %1027 = vmatmul.f32.gmra.mxu0 %v988
    %v1028 = vpop.f32.mrf.mxu0
    %v1029 = vadd.f32 0.0, %v1028
    %1030 = vmatmul.f32.gmra.mxu0 %v991
    %v1031 = vpop.f32.mrf.mxu0
    %v1032 = vadd.f32 0.0, %v1031
    %1033 = vmatmul.f32.gmra.mxu0 %v994
    %v1034 = vpop.f32.mrf.mxu0
    %v1035 = vadd.f32 0.0, %v1034
    %1036 = vmatmul.f32.gmra.mxu0 %v997
    %v1037 = vpop.f32.mrf.mxu0
    %v1038 = vadd.f32 0.0, %v1037
    %1039 = vmatmul.f32.gmra.mxu0 %v1000
    %v1040 = vpop.f32.mrf.mxu0
    %v1041 = vadd.f32 0.0, %v1040
    %1042 = vdwg.mxu0
    %1045 = vrot.lane.b32.xlu0 %v1026, 8
    %v1046 = vpop.permute.xlu0 %1045
    %1047 = vrot.lane.b32.xlu0 %v1029, 8
    %v1048 = vpop.permute.xlu0 %1047
    %1053 = vrot.lane.b32.xlu0 %v1032, 16
    %v1054 = vpop.permute.xlu0 %1053
    %1055 = vrot.lane.b32.xlu0 %v1035, 16
    %v1056 = vpop.permute.xlu0 %1055
    %1061 = vrot.lane.b32.xlu0 %v1038, 24
    %v1062 = vpop.permute.xlu0 %1061
    %1063 = vrot.lane.b32.xlu0 %v1041, 24
    %v1064 = vpop.permute.xlu0 %1063
    %v1067 = vsel %vm218, %v1020, %v1046
    %v1068 = vsel %vm218, %v1023, %v1048
    %v1069 = vsel %vm495, %v1067, %v1054
    %v1070 = vsel %vm495, %v1068, %v1056
    %v1071 = vsel %vm498, %v1069, %v1062
    %v1072 = vsel %vm498, %v1070, %v1064
    %s1073 = scalar_lea.vmem %s6, 32
    %v1074 = vld [vmem:[%s1073] sm:$0xff]
    %v1075 = vld [vmem:[%s1073 + $0x8] sm:$0xff]
    %v1076 = vld [vmem:[%s1073 + $0x10] sm:$0xff]
    %v1077 = vld [vmem:[%s1073 + $0x18] sm:$0xff]
    %v1078 = vld [vmem:[%s7 + $0x1] sm:$0x1]
    %v1079 = vperm.slane %v1078, 0
    %v1081 = vsel %vm158, %v1071, 0
    %v1084 = vsel %vm158, %v1072, 0
    %1086 = vmatpush.msra.mxu0 0.0
    %1087 = vmatpush.msra.mxu0 0.0
    %1088 = vmatpush.msra.mxu0 0.0
    %1089 = vmatpush.msra.mxu0 0.0
    %1090 = vmatpush.msra.mxu0 0.0
    %1091 = vmatpush.msra.mxu0 0.0
    %1092 = vmatpush.msra.mxu0 0.0
    %1093 = vmatpush.msra.mxu0 0.0
    %1094 = vmatpush.msra.mxu0 0.0
    %1095 = vmatpush.msra.mxu0 0.0
    %1096 = vmatpush.msra.mxu0 0.0
    %1097 = vmatpush.msra.mxu0 0.0
    %1098 = vmatpush.msra.mxu0 %v1077
    %1099 = vmatpush.msra.mxu0 %v1076
    %1100 = vmatpush.msra.mxu0 %v1075
    %1101 = vmatpush.msra.mxu0 %v1074
    %1102 = vmatmul.f32.gmra.mxu0 %v1081
    %v1103 = vpop.f32.mrf.mxu0
    %v1104 = vadd.f32 %v1079, %v1103
    %1105 = vmatmul.f32.gmra.mxu0 %v1084
    %v1106 = vpop.f32.mrf.mxu0
    %v1107 = vadd.f32 %v1079, %v1106
    %1108 = vdwg.mxu0
    %v1109 = vadd.f32 %v725, %v1104
    %v1110 = vadd.f32 %v726, %v1107
    %v1111 = vld [vmem:[%s8 + $0x1] sm:$0x1]
    %v1112 = vld [vmem:[%s9 + $0x1] sm:$0x1]
    %v1113 = vsel %vm158, %v1109, 0.0
    %1114 = vadd.xlane.f32.xlu0 %v1113
    %v1115 = vpop.xlane.xlu0 %1114
    %v1116 = vsel %vm158, %v1110, 0.0
    %1117 = vadd.xlane.f32.xlu0 %v1116
    %v1118 = vpop.xlane.xlu0 %1117
    %v1119 = vmul.f32 %v1115, %v552
    %v1120 = vmul.f32 %v1118, %v552
    %v1121 = vsub.f32 %v1109, %v1119
    %v1122 = vsub.f32 %v1110, %v1120
    %v1123 = vmul.f32 %v1121, %v1121
    %v1124 = vmul.f32 %v1122, %v1122
    %v1125 = vsel %vm158, %v1123, 0.0
    %1126 = vadd.xlane.f32.xlu0 %v1125
    %v1127 = vpop.xlane.xlu0 %1126
    %v1128 = vsel %vm158, %v1124, 0.0
    %1129 = vadd.xlane.f32.xlu0 %v1128
    %v1130 = vpop.xlane.xlu0 %1129
    %v1131 = vmul.f32 %v1127, %v552
    %v1132 = vmul.f32 %v1130, %v552
    %v1133 = vadd.f32 %v1131, 1e-05
    %v1134 = vadd.f32 %v1132, 1e-05
    %v1135 = vrsqrt.pop %v1133
    %v1136 = vmul.f32 %v1135, %v1133
    %v1137 = vmul.f32 %v1136, %v1135
    %v1138 = vmul.f32 0.5, %v1137
    %v1139 = vsub.f32 1.5, %v1138
    %v1140 = vmul.f32 %v1135, %v1139
    %vm1141 = vweird.f32 %v1133
    %vm1142 = vweird.f32 %v1135
    %vm1143 = vmor %vm1141, %vm1142
    %v1144 = vsel %vm1143, %v1135, %v1140
    %v1145 = vrsqrt.pop %v1134
    %v1146 = vmul.f32 %v1145, %v1134
    %v1147 = vmul.f32 %v1146, %v1145
    %v1148 = vmul.f32 0.5, %v1147
    %v1149 = vsub.f32 1.5, %v1148
    %v1150 = vmul.f32 %v1145, %v1149
    %vm1151 = vweird.f32 %v1134
    %vm1152 = vweird.f32 %v1145
    %vm1153 = vmor %vm1151, %vm1152
    %v1154 = vsel %vm1153, %v1145, %v1150
    %v1155 = vmul.f32 %v1121, %v1144
    %v1156 = vmul.f32 %v1122, %v1154
    %v1157 = vperm.slane %v1111, 0
    %v1158 = vmul.f32 %v1155, %v1157
    %v1159 = vmul.f32 %v1156, %v1157
    %v1160 = vperm.slane %v1112, 0
    %v1161 = vadd.f32 %v1158, %v1160
    %v1162 = vadd.f32 %v1159, %v1160
    %s1163 = scalar_lea.vmem %s10, 32
    %v1164 = vld [vmem:[%s1163] sm:$0xff]
    %v1165 = vld [vmem:[%s1163 + $0x8] sm:$0xff]
    %v1166 = vld [vmem:[%s1163 + $0x10] sm:$0xff]
    %v1167 = vld [vmem:[%s1163 + $0x18] sm:$0xff]
    %v1168 = vld [vmem:[#allocation2 + $0x1] sm:$0x1]
    %v1169 = vperm.slane %v1168, 0
    %v1171 = vsel %vm158, %v1161, 0
    %v1174 = vsel %vm158, %v1162, 0
    %1176 = vmatpush.msra.mxu0 0.0
    %1177 = vmatpush.msra.mxu0 0.0
    %1178 = vmatpush.msra.mxu0 0.0
    %1179 = vmatpush.msra.mxu0 0.0
    %1180 = vmatpush.msra.mxu0 0.0
    %1181 = vmatpush.msra.mxu0 0.0
    %1182 = vmatpush.msra.mxu0 0.0
    %1183 = vmatpush.msra.mxu0 0.0
    %1184 = vmatpush.msra.mxu0 0.0
    %1185 = vmatpush.msra.mxu0 0.0
    %1186 = vmatpush.msra.mxu0 0.0
    %1187 = vmatpush.msra.mxu0 0.0
    %1188 = vmatpush.msra.mxu0 %v1167
    %1189 = vmatpush.msra.mxu0 %v1166
    %1190 = vmatpush.msra.mxu0 %v1165
    %1191 = vmatpush.msra.mxu0 %v1164
    %1192 = vmatmul.f32.gmra.mxu0 %v1171
    %v1193 = vpop.f32.mrf.mxu0
    %v1194 = vadd.f32 %v1169, %v1193
    %1195 = vmatmul.f32.gmra.mxu0 %v1174
    %v1196 = vpop.f32.mrf.mxu0
    %v1197 = vadd.f32 %v1169, %v1196
    %1198 = vdwg.mxu0
    %v1199 = vmax.f32 %v1194, 0.0
    %v1200 = vmax.f32 %v1197, 0.0
    %s1201 = scalar_lea.vmem %s12, 64
    %v1202 = vld [vmem:[%s1201] sm:$0xff]
    %v1203 = vld [vmem:[%s1201 + $0x8] sm:$0xff]
    %v1204 = vld [vmem:[%s1201 + $0x10] sm:$0xff]
    %v1205 = vld [vmem:[%s1201 + $0x18] sm:$0xff]
    %v1206 = vld [vmem:[%s1201 + $0x20] sm:$0xff]
    %v1207 = vld [vmem:[%s1201 + $0x28] sm:$0xff]
    %v1208 = vld [vmem:[%s1201 + $0x30] sm:$0xff]
    %v1209 = vld [vmem:[%s1201 + $0x38] sm:$0xff]
    %v1210 = vld [vmem:[%s13 + $0x1] sm:$0x1]
    %v1211 = vperm.slane %v1210, 0
    %v1213 = vsel %vm114, %v1199, 0
    %v1216 = vsel %vm114, %v1200, 0
    %1218 = vmatpush.msra.mxu0 0.0
    %1219 = vmatpush.msra.mxu0 0.0
    %1220 = vmatpush.msra.mxu0 0.0
    %1221 = vmatpush.msra.mxu0 0.0
    %1222 = vmatpush.msra.mxu0 0.0
    %1223 = vmatpush.msra.mxu0 0.0
    %1224 = vmatpush.msra.mxu0 0.0
    %1225 = vmatpush.msra.mxu0 0.0
    %1226 = vmatpush.msra.mxu0 %v1209
    %1227 = vmatpush.msra.mxu0 %v1208
    %1228 = vmatpush.msra.mxu0 %v1207
    %1229 = vmatpush.msra.mxu0 %v1206
    %1230 = vmatpush.msra.mxu0 %v1205
    %1231 = vmatpush.msra.mxu0 %v1204
    %1232 = vmatpush.msra.mxu0 %v1203
    %1233 = vmatpush.msra.mxu0 %v1202
    %1234 = vmatmul.f32.gmra.mxu0 %v1213
    %v1235 = vpop.f32.mrf.mxu0
    %v1236 = vadd.f32 %v1211, %v1235
    %1237 = vmatmul.f32.gmra.mxu0 %v1216
    %v1238 = vpop.f32.mrf.mxu0
    %v1239 = vadd.f32 %v1211, %v1238
    %1240 = vdwg.mxu0
    %v1241 = vadd.f32 %v1161, %v1236
    %v1242 = vadd.f32 %v1162, %v1239
    %v1243 = vld [vmem:[%s14 + $0x1] sm:$0x1]
    %v1244 = vld [vmem:[#allocation5 + $0x1] sm:$0x1]
    %v1245 = vsel %vm158, %v1241, 0.0
    %1246 = vadd.xlane.f32.xlu0 %v1245
    %v1247 = vpop.xlane.xlu0 %1246
    %v1248 = vsel %vm158, %v1242, 0.0
    %1249 = vadd.xlane.f32.xlu0 %v1248
    %v1250 = vpop.xlane.xlu0 %1249
    %v1251 = vmul.f32 %v1247, %v552
    %v1252 = vmul.f32 %v1250, %v552
    %v1253 = vsub.f32 %v1241, %v1251
    %v1254 = vsub.f32 %v1242, %v1252
    %v1255 = vmul.f32 %v1253, %v1253
    %v1256 = vmul.f32 %v1254, %v1254
    %v1257 = vsel %vm158, %v1255, 0.0
    %1258 = vadd.xlane.f32.xlu0 %v1257
    %v1259 = vpop.xlane.xlu0 %1258
    %v1260 = vsel %vm158, %v1256, 0.0
    %1261 = vadd.xlane.f32.xlu0 %v1260
    %v1262 = vpop.xlane.xlu0 %1261
    %v1263 = vmul.f32 %v1259, %v552
    %v1264 = vmul.f32 %v1262, %v552
    %v1265 = vadd.f32 %v1263, 1e-05
    %v1266 = vadd.f32 %v1264, 1e-05
    %v1267 = vrsqrt.pop %v1265
    %v1268 = vmul.f32 %v1267, %v1265
    %v1269 = vmul.f32 %v1268, %v1267
    %v1270 = vmul.f32 0.5, %v1269
    %v1271 = vsub.f32 1.5, %v1270
    %v1272 = vmul.f32 %v1267, %v1271
    %vm1273 = vweird.f32 %v1265
    %vm1274 = vweird.f32 %v1267
    %vm1275 = vmor %vm1273, %vm1274
    %v1276 = vsel %vm1275, %v1267, %v1272
    %v1277 = vrsqrt.pop %v1266
    %v1278 = vmul.f32 %v1277, %v1266
    %v1279 = vmul.f32 %v1278, %v1277
    %v1280 = vmul.f32 0.5, %v1279
    %v1281 = vsub.f32 1.5, %v1280
    %v1282 = vmul.f32 %v1277, %v1281
    %vm1283 = vweird.f32 %v1266
    %vm1284 = vweird.f32 %v1277
    %vm1285 = vmor %vm1283, %vm1284
    %v1286 = vsel %vm1285, %v1277, %v1282
    %v1287 = vmul.f32 %v1253, %v1276
    %v1288 = vmul.f32 %v1254, %v1286
    %v1289 = vperm.slane %v1243, 0
    %v1290 = vmul.f32 %v1287, %v1289
    %v1291 = vmul.f32 %v1288, %v1289
    %v1292 = vperm.slane %v1244, 0
    %v1293 = vadd.f32 %v1290, %v1292
    %v1294 = vadd.f32 %v1291, %v1292
    %v1295 = vld [vmem:[%s16] sm:$0xff]
    %v1296 = vld [vmem:[%s16 + $0x8] sm:$0xff]
    %v1297 = vld [vmem:[%s16 + $0x10] sm:$0xff]
    %v1298 = vld [vmem:[%s16 + $0x18] sm:$0xff]
    %v1299 = vld [vmem:[%s17] sm:$0x1]
    %v1301 = vperm.slane %v1299, 0
    %v1304 = vsel %vm158, %v1293, 0
    %v1307 = vsel %vm158, %v1294, 0
    %1309 = vmatpush.msra.mxu0 0.0
    %1310 = vmatpush.msra.mxu0 0.0
    %1311 = vmatpush.msra.mxu0 0.0
    %1312 = vmatpush.msra.mxu0 0.0
    %1313 = vmatpush.msra.mxu0 0.0
    %1314 = vmatpush.msra.mxu0 0.0
    %1315 = vmatpush.msra.mxu0 0.0
    %1316 = vmatpush.msra.mxu0 0.0
    %1317 = vmatpush.msra.mxu0 0.0
    %1318 = vmatpush.msra.mxu0 0.0
    %1319 = vmatpush.msra.mxu0 0.0
    %1320 = vmatpush.msra.mxu0 0.0
    %1321 = vmatpush.msra.mxu0 %v1298
    %1322 = vmatpush.msra.mxu0 %v1297
    %1323 = vmatpush.msra.mxu0 %v1296
    %1324 = vmatpush.msra.mxu0 %v1295
    %1325 = vmatmul.f32.gmra.mxu0 %v1304
    %v1326 = vpop.f32.mrf.mxu0
    %v1327 = vadd.f32 %v1301, %v1326
    %1328 = vmatmul.f32.gmra.mxu0 %v1307
    %v1329 = vpop.f32.mrf.mxu0
    %v1330 = vadd.f32 %v1301, %v1329
    %1331 = vdwg.mxu0
    %1332 = vst.msk [vmem:[#allocation7] sm:$0xff] %vm114, %v1327
    %1333 = vst.msk [vmem:[#allocation7 + $0x8] sm:$0xff] %vm114, %v1330
    // Predicated region
    $region82: #{tpu_custom_call.1} parent=1 // pred_check
      _
    $region83: #{tpu_custom_call.1} parent=1 // pred_check_branch
      %1335 = sbr.rel (0) target = $region85
    $region84: #{tpu_custom_call.1} parent=1 // pred_region
      %1337 = vsyncadd [#allocation4], 0
      %s1338 = sshll.u32 [#allocation7], 4
      %s1339 = int_to_ptr.vmem [resolvable:$true] %s1338
      %s1340 = sshll.u32 %s18, 4
      %s1341 = int_to_ptr.hbm [resolvable:$true] %s1340
      %1346 = dma.vmem_to_hbm [thread:$0]  %s1339, 256, %s1341, [#allocation4], 128, 128, 8
    $region85: #{tpu_custom_call.1} parent=1 // pred_fallthru
      _
    // Predicated region
    $region86: #{tpu_custom_call.1} parent=1 // pred_check
      _
    $region87: #{tpu_custom_call.1} parent=1 // pred_check_branch
      %1348 = sbr.rel (0) target = $region89
    $region88: #{tpu_custom_call.1} parent=1 // pred_region
      %1350 = dma.done [#allocation4], 256
    $region89: #{tpu_custom_call.1} parent=1 // pred_fallthru
      _
    %1351 = vsyncpa [#allocation3], 1
    %1352 = vsyncpa [#allocation6], 1
    %1353 = vsyncpa [#allocation4], 1

</llo_original>
